<compile_context>
chip_gen: v5e
topology: v5e:2x2
jax: 0.10.0
libtpu: 0.0.40
codegen_flags: <defaults>
</compile_context>

<pallas_src>
import functools
import math

import jax
import jax.numpy as jnp
from jax.experimental import pallas as pl
from jax.experimental.pallas import tpu as pltpu


LANE = 128
_VMEM_LIMIT = 32 * 1024 * 1024   # <= default scoped limit on v6e/v7x, OK on v5e.


def _round_up(x, m):
    return (x + m - 1) // m * m


def _batch_block(n):
    """Images per grid step: whole batch on 1-TC parts, split on 2-TC v7x."""
    try:
        kind = jax.devices()[0].device_kind.lower()
    except Exception:
        kind = ""
    if ("v7" in kind or "7x" in kind) and n >= 2 and n % 2 == 0:
        return n // 2
    return n


# ---------------- fused conv + bias + ReLU + 2x2 max-pool kernel ------------


def _conv_relu_pool_kernel(x_ref, w_ref, b_ref, o_ref, hp_ref, *,
                           KH, KW, OH, OWp, POH, POW):
    """One grid step processes NB images.

    x_ref : (NB, Hp, Wp, Cin)    bf16  (for conv1: pre-gathered patches with
                                        Hp=OH, Wp=OWp, Cin=Kdim, KH=KW=1)
    w_ref : (KH, KW*Cin, Cout)   bf16  (KW taps folded into the contraction)
    b_ref : (1, Cout)            f32
    o_ref : (NB, POH, POW, Cout)
    hp_ref: (NB*POH, OWp, Cout)  f32 scratch (height-pooled rows).
    """
    nb, _, _, cin = x_ref.shape
    cout = o_ref.shape[-1]
    kfold = KW * cin
    rows_m = nb * OH * OWp

    x = x_ref[...]
    acc = jnp.zeros((rows_m, cout), jnp.float32)
    for i in range(KH):                                   # KH shifted, KW-folded dots
        rows = x[:, i:i + OH]                             # (NB, OH, Wp, Cin)
        if KW == 1:
            patch = rows[:, :, :OWp, :]
        else:
            patch = jnp.concatenate(
                [rows[:, :, j:j + OWp, :] for j in range(KW)], axis=-1)
        acc = acc + jnp.dot(patch.reshape(rows_m, kfold), w_ref[i],
                            preferred_element_type=jnp.float32)
    acc = jnp.maximum(acc + b_ref[...], 0.0)              # bias + ReLU in f32

    # 2x2 max-pool (floor mode).  Height pairs: free leading-dim regrouping.
    a = acc.reshape(nb, OH, OWp, cout)[:, :2 * POH]
    a = a.reshape(nb * POH, 2, OWp, cout)
    hp_ref[...] = jnp.maximum(a[:, 0], a[:, 1])           # (NB*POH, OWp, Cout)
    # Width pairs: two stride-2 loads from scratch + one max + one dense store.
    left = hp_ref[:, pl.ds(0, POW, stride=2), :]
    right = hp_ref[:, pl.ds(1, POW, stride=2), :]
    o_ref[...] = jnp.maximum(left, right).reshape(
        nb, POH, POW, cout).astype(o_ref.dtype)


def conv_relu_pool(x, w, b, *, ksz, padding, nb):
    """Fused Conv2d(stride=1) + ReLU + MaxPool2d(2,2).

    x: (N, H, W, Cin) bf16, w: (ksz, ksz*Cin, Cout) bf16, b: (Cout,) f32.
    """
    N, H, W, Cin = x.shape
    KH, kfold, Cout = w.shape
    assert KH == ksz and kfold == ksz * Cin and N % nb == 0
    OH = H + 2 * padding - ksz + 1
    OW = W + 2 * padding - ksz + 1
    POH, POW = OH // 2, OW // 2
    OWp = _round_up(OW, 8)                 # sublane-aligned conv-output width
    Hp = H + 2 * padding
    Wp = OWp + ksz - 1                     # >= W + 2*padding
    xp = jnp.pad(x, ((0, 0), (padding, padding),
                     (padding, Wp - W - padding), (0, 0)))
    return pl.pallas_call(
        functools.partial(_conv_relu_pool_kernel, KH=ksz, KW=ksz, OH=OH,
                          OWp=OWp, POH=POH, POW=POW),
        out_shape=jax.ShapeDtypeStruct((N, POH, POW, Cout), jnp.bfloat16),
        grid=(N // nb,),
        in_specs=[
            pl.BlockSpec((nb, Hp, Wp, Cin), lambda n: (n, 0, 0, 0)),
            pl.BlockSpec((KH, kfold, Cout), lambda n: (0, 0, 0)),
            pl.BlockSpec((1, Cout), lambda n: (0, 0)),
        ],
        out_specs=pl.BlockSpec((nb, POH, POW, Cout), lambda n: (n, 0, 0, 0)),
        scratch_shapes=[pltpu.VMEM((nb * POH, OWp, Cout), jnp.float32)],
        compiler_params=pltpu.CompilerParams(
            dimension_semantics=("parallel",),
            vmem_limit_bytes=_VMEM_LIMIT),
    )(xp, w, b.reshape(1, Cout).astype(jnp.float32))


# --------------- first conv (strided, Cin=3): patch gather + fused ----------


def conv1_relu_pool(x, w, b, *, ksz, stride, padding, nb):
    """Strided first conv.  A tiny wrapper-side strided patch gather (stride-3
    downsample keeps it small) feeds the same fused matmul+bias+ReLU+pool
    kernel.  w: (1, Kdim, Cout) with Kdim lane-padded to 128."""
    N, H, W, Cin = x.shape
    assert N % nb == 0
    _, kdim, cout = w.shape
    OH = (H + 2 * padding - ksz) // stride + 1
    OW = (W + 2 * padding - ksz) // stride + 1
    POH, POW = OH // 2, OW // 2
    OWp = _round_up(OW, 8)
    need_h = (OH - 1) * stride + ksz
    need_w = (OWp - 1) * stride + ksz
    xp = jnp.pad(x, ((0, 0), (padding, max(0, need_h - H - padding)),
                     (padding, max(0, need_w - W - padding)), (0, 0)))
    taps = [xp[:, i:i + (OH - 1) * stride + 1:stride,
               j:j + (OWp - 1) * stride + 1:stride, :]
            for i in range(ksz) for j in range(ksz)]
    fan_in = ksz * ksz * Cin
    if kdim > fan_in:                       # K pad 75 -> 128 via a zeros tap
        taps.append(jnp.zeros((N, OH, OWp, kdim - fan_in), x.dtype))
    p = jnp.concatenate(taps, axis=-1)      # (N, OH, OWp, Kdim)
    return pl.pallas_call(
        functools.partial(_conv_relu_pool_kernel, KH=1, KW=1, OH=OH,
                          OWp=OWp, POH=POH, POW=POW),
        out_shape=jax.ShapeDtypeStruct((N, POH, POW, cout), jnp.bfloat16),
        grid=(N // nb,),
        in_specs=[
            pl.BlockSpec((nb, OH, OWp, kdim), lambda n: (n, 0, 0, 0)),
            pl.BlockSpec((1, kdim, cout), lambda n: (0, 0, 0)),
            pl.BlockSpec((1, cout), lambda n: (0, 0)),
        ],
        out_specs=pl.BlockSpec((nb, POH, POW, cout), lambda n: (n, 0, 0, 0)),
        scratch_shapes=[pltpu.VMEM((nb * POH, OWp, cout), jnp.float32)],
        compiler_params=pltpu.CompilerParams(
            dimension_semantics=("parallel",),
            vmem_limit_bytes=_VMEM_LIMIT),
    )(p, w, b.reshape(1, cout).astype(jnp.float32))


# ----------- fused tail: 1x1 conv + ReLU + 2x2 pool + Flatten + Linear ------


def _tail_kernel(x_ref, w1_ref, b1_ref, w2_ref, b2_ref, o_ref):
    # x_ref: (N, S, S, Cin).  Final pool output is 1x1, so only the top-left
    # 2x2 window of 1x1-conv outputs is needed.
    def conv_at(i, j):
        v = x_ref[:, i, j, :]                                  # (N, Cin) bf16
        y = jnp.dot(v, w1_ref[...], preferred_element_type=jnp.float32)
        return jnp.maximum(y + b1_ref[...], 0.0)               # (N, Cout) f32

    pooled = jnp.maximum(jnp.maximum(conv_at(0, 0), conv_at(0, 1)),
                         jnp.maximum(conv_at(1, 0), conv_at(1, 1)))
    out = jnp.dot(pooled.astype(w2_ref.dtype), w2_ref[...],
                  preferred_element_type=jnp.float32) + b2_ref[...]
    o_ref[...] = out.astype(o_ref.dtype)


def tail_conv1x1_pool_linear(x, w1, b1, w2, b2):
    """x: (N, S, S, Cin) with S//2 == 1.  Returns (N, Npad) f32 logits."""
    N, S, S2, Cin = x.shape
    assert S == S2 and S // 2 == 1, (S, S2)
    Cout = w1.shape[1]
    Npad = w2.shape[1]
    return pl.pallas_call(
        _tail_kernel,
        out_shape=jax.ShapeDtypeStruct((N, Npad), jnp.float32),
        grid=(1,),
        in_specs=[
            pl.BlockSpec((N, S, S, Cin), lambda i: (0, 0, 0, 0)),
            pl.BlockSpec((Cin, Cout), lambda i: (0, 0)),
            pl.BlockSpec((1, Cout), lambda i: (0, 0)),
            pl.BlockSpec((Cout, Npad), lambda i: (0, 0)),
            pl.BlockSpec((1, Npad), lambda i: (0, 0)),
        ],
        out_specs=pl.BlockSpec((N, Npad), lambda i: (0, 0)),
        compiler_params=pltpu.CompilerParams(
            dimension_semantics=("arbitrary",),
            vmem_limit_bytes=_VMEM_LIMIT),
    )(x, w1, b1.reshape(1, Cout).astype(jnp.float32),
      w2, b2.reshape(1, Npad).astype(jnp.float32))


# -------------------------- parameter construction --------------------------


def build_cnn(key, input_dim, kernel, num_layers, n_outputs):
    """Mirrors CNN.__init__ layer-shape construction with synthetic init.
    Intermediate channels / logits are zero-padded to 128 lanes (zero filters,
    zero bias) which leaves the forward math exactly unchanged."""
    cfgs = []
    n_in, n_out, ksz = 3, 64, kernel
    cfgs.append(dict(cin=n_in, cout=n_out, k=ksz, stride=3, padding=3))
    for _ in range(num_layers - 2):
        n_in = n_out
        if n_out <= 256:
            n_out *= 2
        if ksz > 3:
            ksz -= 2
        cfgs.append(dict(cin=n_in, cout=n_out, k=ksz, stride=1, padding=1))
    n_in = n_out
    if n_out <= 256:
        n_out *= 2
    cfgs.append(dict(cin=n_in, cout=n_out, k=1, stride=1, padding=0))

    # Spatial trace (conv -> relu -> maxpool(2,2)) like the module's sample pass.
    H, W = input_dim
    for c in cfgs:
        H = (H + 2 * c["padding"] - c["k"]) // c["stride"] + 1
        W = (W + 2 * c["padding"] - c["k"]) // c["stride"] + 1
        H, W = H // 2, W // 2
    flat_dim = n_out * H * W
    assert H == 1 and W == 1, "fused tail assumes a 1x1 final feature map"
    assert cfgs[-1]["cout"] % LANE == 0, "final conv cout must stay lane-exact"

    params = {}
    cfg = dict(n_outputs=n_outputs, flat_dim=flat_dim)

    # conv1: im2col weight matrix, K (75->128) and Cout (64->128) zero-padded.
    c0 = cfgs[0]
    key, k1, k2 = jax.random.split(key, 3)
    fan_in = c0["cin"] * c0["k"] ** 2
    w_real = jax.random.normal(
        k1, (c0["k"], c0["k"], c0["cin"], c0["cout"]), jnp.float32
    ) / math.sqrt(fan_in)
    b_real = 0.01 * jax.random.normal(k2, (c0["cout"],), jnp.float32)
    cout0 = _round_up(c0["cout"], LANE)
    kdim = _round_up(fan_in, LANE)
    w2 = jnp.zeros((kdim, cout0), jnp.float32).at[:fan_in, :c0["cout"]].set(
        w_real.reshape(fan_in, c0["cout"]))
    params["conv1_w"] = w2[None].astype(jnp.bfloat16)        # (1, Kdim, Cout)
    params["conv1_b"] = jnp.zeros((cout0,), jnp.float32).at[:c0["cout"]].set(b_real)
    cfg["conv1"] = dict(k=c0["k"], stride=c0["stride"], padding=c0["padding"])

    # Middle stride-1 convs: weights stored KW-folded as (KH, KW*Cin, Cout).
    conv_w, conv_b, conv_cfg = [], [], []
    prev_cout = cout0
    for c in cfgs[1:-1]:
        key, k1, k2 = jax.random.split(key, 3)
        fan_in = c["cin"] * c["k"] ** 2
        w_real = jax.random.normal(
            k1, (c["k"], c["k"], c["cin"], c["cout"]), jnp.float32
        ) / math.sqrt(fan_in)
        b_real = 0.01 * jax.random.normal(k2, (c["cout"],), jnp.float32)
        cin_s = prev_cout
        cout_s = _round_up(c["cout"], LANE)
        w = jnp.zeros((c["k"], c["k"], cin_s, cout_s), jnp.float32)
        w = w.at[:, :, :c["cin"], :c["cout"]].set(w_real)
        conv_w.append(w.reshape(c["k"], c["k"] * cin_s, cout_s).astype(jnp.bfloat16))
        conv_b.append(jnp.zeros((cout_s,), jnp.float32).at[:c["cout"]].set(b_real))
        conv_cfg.append(dict(k=c["k"], padding=c["padding"]))
        prev_cout = cout_s
    params["conv_w"] = conv_w
    params["conv_b"] = conv_b
    cfg["convs"] = conv_cfg

    # Final 1x1 conv (kept at its real, lane-exact cout -> flat_dim matches).
    cl = cfgs[-1]
    key, k1, k2 = jax.random.split(key, 3)
    w_real = jax.random.normal(
        k1, (cl["cin"], cl["cout"]), jnp.float32) / math.sqrt(cl["cin"])
    b_real = 0.01 * jax.random.normal(k2, (cl["cout"],), jnp.float32)
    w1x1 = jnp.zeros((prev_cout, cl["cout"]), jnp.float32).at[:cl["cin"], :].set(w_real)
    params["last_w"] = w1x1.astype(jnp.bfloat16)
    params["last_b"] = b_real

    # outlayer: kaiming_normal_(a=0.2, fan_in, leaky_relu); output padded to
    # 128 lanes so the final store is lane-dense (real logits sliced outside).
    key, k1 = jax.random.split(key)
    gain = math.sqrt(2.0 / (1.0 + 0.2 ** 2))
    std = gain / math.sqrt(flat_dim)
    n_pad = _round_up(n_outputs, LANE)
    lin_w = jnp.zeros((flat_dim, n_pad), jnp.float32).at[:, :n_outputs].set(
        std * jax.random.normal(k1, (flat_dim, n_outputs), jnp.float32))
    params["lin_w"] = lin_w.astype(jnp.bfloat16)
    params["lin_b"] = jnp.zeros((n_pad,), jnp.float32)
    return params, cfg


# --------------------------------- forward ----------------------------------


def cnn_forward(params, x_nchw, *, cfg, nb):
    # NCHW (PyTorch) -> NHWC (channels on lanes), bf16 MXU inputs.
    x = jnp.transpose(x_nchw, (0, 2, 3, 1)).astype(jnp.bfloat16)
    c1 = cfg["conv1"]
    x = conv1_relu_pool(x, params["conv1_w"], params["conv1_b"],
                        ksz=c1["k"], stride=c1["stride"],
                        padding=c1["padding"], nb=nb)
    for c, w, b in zip(cfg["convs"], params["conv_w"], params["conv_b"]):
        x = conv_relu_pool(x, w, b, ksz=c["k"], padding=c["padding"], nb=nb)
    # Fused tail: 1x1 conv + ReLU + 2x2 pool (-> 1x1) + Flatten + Linear.
    # Flatten order is trivially NCHW-consistent since the feature map is 1x1.
    y = tail_conv1x1_pool_linear(x, params["last_w"], params["last_b"],
                                 params["lin_w"], params["lin_b"])
    return y[:, :cfg["n_outputs"]]


if __name__ == "__main__":
    input_dim = (32, 32)   # CNN(input_dim=(32,32), kernel=5, num_layers=3, n_outputs=10)
    kernel = 5
    num_layers = 3
    n_outputs = 10
    batch = 2

    key = jax.random.PRNGKey(0)
    k_params, k_x = jax.random.split(key)
    params, cfg = build_cnn(k_params, input_dim, kernel, num_layers, n_outputs)

    x = jax.random.normal(
        k_x, (batch, 3, input_dim[0], input_dim[1]), jnp.float32)

    nb = _batch_block(batch)
    fwd = jax.jit(functools.partial(cnn_forward, cfg=cfg, nb=nb))
    y = jax.block_until_ready(fwd(params, x))
    assert y.shape == (batch, n_outputs), y.shape
    assert bool(jnp.all(jnp.isfinite(y)))
    print("KERNEL_OK")
</pallas_src>

<mosaic_0001>
module attributes {stable_mosaic.version = 11 : i64} {
  func.func @_conv_relu_pool_kernel(%arg0: i32, %arg1: memref<2x12x16x128xbf16, #tpu.memory_space<vmem>>, %arg2: memref<1x128x128xbf16, #tpu.memory_space<vmem>>, %arg3: memref<1x128xf32, #tpu.memory_space<vmem>>, %arg4: memref<2x6x6x128xbf16, #tpu.memory_space<vmem>>, %arg5: memref<12x16x128xf32, #tpu.memory_space<vmem>>) attributes {dimension_semantics = [#tpu.dimension_semantics<parallel>], iteration_bounds = array<i64: 1>, scalar_prefetch = 0 : i64, scratch_operands = 1 : i64, tpu.core_type = #tpu.core_type<tc>, window_params = [{transform_indices = @transform_0, window_bounds = array<i64: 2, 12, 16, 128>}, {pipeline_mode = #tpu.pipeline_mode<synchronous>, transform_indices = @transform_1, window_bounds = array<i64: 1, 128, 128>}, {pipeline_mode = #tpu.pipeline_mode<synchronous>, transform_indices = @transform_2, window_bounds = array<i64: 1, 128>}, {transform_indices = @transform_3, window_bounds = array<i64: 2, 6, 6, 128>}]} {
    %c0 = arith.constant 0 : index
    %c0_0 = arith.constant 0 : index
    %c0_1 = arith.constant 0 : index
    %c0_2 = arith.constant 0 : index
    %0 = vector.load %arg1[%c0, %c0_0, %c0_1, %c0_2] : memref<2x12x16x128xbf16, #tpu.memory_space<vmem>>, vector<2x12x16x128xbf16>
    %cst = arith.constant 0.000000e+00 : f32
    %1 = vector.broadcast %cst : f32 to vector<384x128xf32>
    %2 = vector.shape_cast %0 : vector<2x12x16x128xbf16> to vector<384x128xbf16>
    %c0_3 = arith.constant 0 : index
    %c0_4 = arith.constant 0 : index
    %c0_5 = arith.constant 0 : index
    %3 = vector.load %arg2[%c0_3, %c0_4, %c0_5] : memref<1x128x128xbf16, #tpu.memory_space<vmem>>, vector<1x128x128xbf16>
    %4 = vector.shape_cast %3 : vector<1x128x128xbf16> to vector<128x128xbf16>
    %cst_6 = arith.constant dense<0.000000e+00> : vector<384x128xf32>
    %5 = tpu.matmul %2, %4, %cst_6 {dimension_numbers = #tpu.dot_dimension_numbers<[1], [0], [0], [1], [0, 0, 1, 1], [], []>} : vector<384x128xbf16>, vector<128x128xbf16>, vector<384x128xf32> -> vector<384x128xf32>
    %6 = arith.addf %1, %5 : vector<384x128xf32>
    %c0_7 = arith.constant 0 : index
    %c0_8 = arith.constant 0 : index
    %7 = vector.load %arg3[%c0_7, %c0_8] : memref<1x128xf32, #tpu.memory_space<vmem>>, vector<1x128xf32>
    %8 = vector.broadcast %7 : vector<1x128xf32> to vector<384x128xf32>
    %9 = arith.addf %6, %8 : vector<384x128xf32>
    %cst_9 = arith.constant 0.000000e+00 : f32
    %10 = vector.broadcast %cst_9 : f32 to vector<384x128xf32>
    %11 = arith.maximumf %9, %10 : vector<384x128xf32>
    %12 = vector.shape_cast %11 : vector<384x128xf32> to vector<2x12x16x128xf32>
    %13 = vector.shape_cast %12 : vector<2x12x16x128xf32> to vector<12x2x16x128xf32>
    %14 = vector.extract_strided_slice %13 {offsets = [0, 0, 0, 0], sizes = [12, 1, 16, 128], strides = [1, 1, 1, 1]} : vector<12x2x16x128xf32> to vector<12x1x16x128xf32>
    %15 = vector.shape_cast %14 : vector<12x1x16x128xf32> to vector<12x16x128xf32>
    %16 = vector.extract_strided_slice %13 {offsets = [0, 1, 0, 0], sizes = [12, 1, 16, 128], strides = [1, 1, 1, 1]} : vector<12x2x16x128xf32> to vector<12x1x16x128xf32>
    %17 = vector.shape_cast %16 : vector<12x1x16x128xf32> to vector<12x16x128xf32>
    %18 = arith.maximumf %15, %17 : vector<12x16x128xf32>
    %c0_10 = arith.constant 0 : index
    %c0_11 = arith.constant 0 : index
    %c0_12 = arith.constant 0 : index
    %19 = vector.load %arg5[%c0_10, %c0_11, %c0_12] : memref<12x16x128xf32, #tpu.memory_space<vmem>>, vector<12x16x128xf32>
    tpu.vector_store %arg5[%c0_10, %c0_11, %c0_12], %18 {strides = array<i32>} : memref<12x16x128xf32, #tpu.memory_space<vmem>>, vector<12x16x128xf32>,
    %c0_13 = arith.constant 0 : index
    %c0_14 = arith.constant 0 : index
    %c0_15 = arith.constant 0 : index
    %20 = tpu.strided_load %arg5[%c0_13, %c0_14, %c0_15] {strides = array<i32: 1, 2, 1>} : memref<12x16x128xf32, #tpu.memory_space<vmem>>, vector<12x6x128xf32>
    %c0_16 = arith.constant 0 : index
    %c1 = arith.constant 1 : index
    %c0_17 = arith.constant 0 : index
    %21 = tpu.strided_load %arg5[%c0_16, %c1, %c0_17] {strides = array<i32: 1, 2, 1>} : memref<12x16x128xf32, #tpu.memory_space<vmem>>, vector<12x6x128xf32>
    %22 = arith.maximumf %20, %21 : vector<12x6x128xf32>
    %23 = vector.shape_cast %22 : vector<12x6x128xf32> to vector<2x6x6x128xf32>
    %24 = arith.truncf %23 : vector<2x6x6x128xf32> to vector<2x6x6x128xbf16>
    %c0_18 = arith.constant 0 : index
    %c0_19 = arith.constant 0 : index
    %c0_20 = arith.constant 0 : index
    %c0_21 = arith.constant 0 : index
    %25 = vector.load %arg4[%c0_18, %c0_19, %c0_20, %c0_21] : memref<2x6x6x128xbf16, #tpu.memory_space<vmem>>, vector<2x6x6x128xbf16>
    tpu.vector_store %arg4[%c0_18, %c0_19, %c0_20, %c0_21], %24 {strides = array<i32>} : memref<2x6x6x128xbf16, #tpu.memory_space<vmem>>, vector<2x6x6x128xbf16>,
    return
  }
  func.func @transform_0(%arg0: i32) -> (i32, i32, i32, i32) {
    %c0_i32 = arith.constant 0 : i32
    %c0_i32_0 = arith.constant 0 : i32
    %c0_i32_1 = arith.constant 0 : i32
    %c0_i32_2 = arith.constant 0 : i32
    return %arg0, %c0_i32, %c0_i32_0, %c0_i32_1 : i32, i32, i32, i32
  }
  func.func @transform_1(%arg0: i32) -> (i32, i32, i32) {
    %c0_i32 = arith.constant 0 : i32
    %c0_i32_0 = arith.constant 0 : i32
    %c0_i32_1 = arith.constant 0 : i32
    %c0_i32_2 = arith.constant 0 : i32
    return %c0_i32, %c0_i32_0, %c0_i32_1 : i32, i32, i32
  }
  func.func @transform_2(%arg0: i32) -> (i32, i32) {
    %c0_i32 = arith.constant 0 : i32
    %c0_i32_0 = arith.constant 0 : i32
    %c0_i32_1 = arith.constant 0 : i32
    return %c0_i32, %c0_i32_0 : i32, i32
  }
  func.func @transform_3(%arg0: i32) -> (i32, i32, i32, i32) {
    %c0_i32 = arith.constant 0 : i32
    %c0_i32_0 = arith.constant 0 : i32
    %c0_i32_1 = arith.constant 0 : i32
    %c0_i32_2 = arith.constant 0 : i32
    return %arg0, %c0_i32, %c0_i32_0, %c0_i32_1 : i32, i32, i32, i32
  }
}

module attributes {stable_mosaic.version = 11 : i64} {
  func.func @_conv_relu_pool_kernel(%arg0: i32, %arg1: memref<2x8x10x128xbf16, #tpu.memory_space<vmem>>, %arg2: memref<3x384x128xbf16, #tpu.memory_space<vmem>>, %arg3: memref<1x128xf32, #tpu.memory_space<vmem>>, %arg4: memref<2x3x3x128xbf16, #tpu.memory_space<vmem>>, %arg5: memref<6x8x128xf32, #tpu.memory_space<vmem>>) attributes {dimension_semantics = [#tpu.dimension_semantics<parallel>], iteration_bounds = array<i64: 1>, scalar_prefetch = 0 : i64, scratch_operands = 1 : i64, tpu.core_type = #tpu.core_type<tc>, window_params = [{transform_indices = @transform_0, window_bounds = array<i64: 2, 8, 10, 128>}, {pipeline_mode = #tpu.pipeline_mode<synchronous>, transform_indices = @transform_1, window_bounds = array<i64: 3, 384, 128>}, {pipeline_mode = #tpu.pipeline_mode<synchronous>, transform_indices = @transform_2, window_bounds = array<i64: 1, 128>}, {transform_indices = @transform_3, window_bounds = array<i64: 2, 3, 3, 128>}]} {
    %c0 = arith.constant 0 : index
    %c0_0 = arith.constant 0 : index
    %c0_1 = arith.constant 0 : index
    %c0_2 = arith.constant 0 : index
    %0 = vector.load %arg1[%c0, %c0_0, %c0_1, %c0_2] : memref<2x8x10x128xbf16, #tpu.memory_space<vmem>>, vector<2x8x10x128xbf16>
    %cst = arith.constant 0.000000e+00 : f32
    %1 = vector.broadcast %cst : f32 to vector<96x128xf32>
    %2 = vector.extract_strided_slice %0 {offsets = [0, 0, 0, 0], sizes = [2, 6, 10, 128], strides = [1, 1, 1, 1]} : vector<2x8x10x128xbf16> to vector<2x6x10x128xbf16>
    %3 = vector.extract_strided_slice %2 {offsets = [0, 0, 0, 0], sizes = [2, 6, 8, 128], strides = [1, 1, 1, 1]} : vector<2x6x10x128xbf16> to vector<2x6x8x128xbf16>
    %4 = vector.extract_strided_slice %2 {offsets = [0, 0, 1, 0], sizes = [2, 6, 8, 128], strides = [1, 1, 1, 1]} : vector<2x6x10x128xbf16> to vector<2x6x8x128xbf16>
    %5 = vector.extract_strided_slice %2 {offsets = [0, 0, 2, 0], sizes = [2, 6, 8, 128], strides = [1, 1, 1, 1]} : vector<2x6x10x128xbf16> to vector<2x6x8x128xbf16>
    %6 = tpu.concatenate %3, %4, %5 in 3 : vector<2x6x8x128xbf16>, vector<2x6x8x128xbf16>, vector<2x6x8x128xbf16> -> vector<2x6x8x384xbf16>
    %7 = vector.shape_cast %6 : vector<2x6x8x384xbf16> to vector<96x384xbf16>
    %c0_3 = arith.constant 0 : index
    %c0_4 = arith.constant 0 : index
    %c0_5 = arith.constant 0 : index
    %8 = vector.load %arg2[%c0_3, %c0_4, %c0_5] : memref<3x384x128xbf16, #tpu.memory_space<vmem>>, vector<1x384x128xbf16>
    %9 = vector.shape_cast %8 : vector<1x384x128xbf16> to vector<384x128xbf16>
    %cst_6 = arith.constant dense<0.000000e+00> : vector<96x128xf32>
    %10 = tpu.matmul %7, %9, %cst_6 {dimension_numbers = #tpu.dot_dimension_numbers<[1], [0], [0], [1], [0, 0, 1, 1], [], []>} : vector<96x384xbf16>, vector<384x128xbf16>, vector<96x128xf32> -> vector<96x128xf32>
    %11 = arith.addf %1, %10 : vector<96x128xf32>
    %12 = vector.extract_strided_slice %0 {offsets = [0, 1, 0, 0], sizes = [2, 6, 10, 128], strides = [1, 1, 1, 1]} : vector<2x8x10x128xbf16> to vector<2x6x10x128xbf16>
    %13 = vector.extract_strided_slice %12 {offsets = [0, 0, 0, 0], sizes = [2, 6, 8, 128], strides = [1, 1, 1, 1]} : vector<2x6x10x128xbf16> to vector<2x6x8x128xbf16>
    %14 = vector.extract_strided_slice %12 {offsets = [0, 0, 1, 0], sizes = [2, 6, 8, 128], strides = [1, 1, 1, 1]} : vector<2x6x10x128xbf16> to vector<2x6x8x128xbf16>
    %15 = vector.extract_strided_slice %12 {offsets = [0, 0, 2, 0], sizes = [2, 6, 8, 128], strides = [1, 1, 1, 1]} : vector<2x6x10x128xbf16> to vector<2x6x8x128xbf16>
    %16 = tpu.concatenate %13, %14, %15 in 3 : vector<2x6x8x128xbf16>, vector<2x6x8x128xbf16>, vector<2x6x8x128xbf16> -> vector<2x6x8x384xbf16>
    %17 = vector.shape_cast %16 : vector<2x6x8x384xbf16> to vector<96x384xbf16>
    %c1 = arith.constant 1 : index
    %c0_7 = arith.constant 0 : index
    %c0_8 = arith.constant 0 : index
    %18 = vector.load %arg2[%c1, %c0_7, %c0_8] : memref<3x384x128xbf16, #tpu.memory_space<vmem>>, vector<1x384x128xbf16>
    %19 = vector.shape_cast %18 : vector<1x384x128xbf16> to vector<384x128xbf16>
    %cst_9 = arith.constant dense<0.000000e+00> : vector<96x128xf32>
    %20 = tpu.matmul %17, %19, %cst_9 {dimension_numbers = #tpu.dot_dimension_numbers<[1], [0], [0], [1], [0, 0, 1, 1], [], []>} : vector<96x384xbf16>, vector<384x128xbf16>, vector<96x128xf32> -> vector<96x128xf32>
    %21 = arith.addf %11, %20 : vector<96x128xf32>
    %22 = vector.extract_strided_slice %0 {offsets = [0, 2, 0, 0], sizes = [2, 6, 10, 128], strides = [1, 1, 1, 1]} : vector<2x8x10x128xbf16> to vector<2x6x10x128xbf16>
    %23 = vector.extract_strided_slice %22 {offsets = [0, 0, 0, 0], sizes = [2, 6, 8, 128], strides = [1, 1, 1, 1]} : vector<2x6x10x128xbf16> to vector<2x6x8x128xbf16>
    %24 = vector.extract_strided_slice %22 {offsets = [0, 0, 1, 0], sizes = [2, 6, 8, 128], strides = [1, 1, 1, 1]} : vector<2x6x10x128xbf16> to vector<2x6x8x128xbf16>
    %25 = vector.extract_strided_slice %22 {offsets = [0, 0, 2, 0], sizes = [2, 6, 8, 128], strides = [1, 1, 1, 1]} : vector<2x6x10x128xbf16> to vector<2x6x8x128xbf16>
    %26 = tpu.concatenate %23, %24, %25 in 3 : vector<2x6x8x128xbf16>, vector<2x6x8x128xbf16>, vector<2x6x8x128xbf16> -> vector<2x6x8x384xbf16>
    %27 = vector.shape_cast %26 : vector<2x6x8x384xbf16> to vector<96x384xbf16>
    %c2 = arith.constant 2 : index
    %c0_10 = arith.constant 0 : index
    %c0_11 = arith.constant 0 : index
    %28 = vector.load %arg2[%c2, %c0_10, %c0_11] : memref<3x384x128xbf16, #tpu.memory_space<vmem>>, vector<1x384x128xbf16>
    %29 = vector.shape_cast %28 : vector<1x384x128xbf16> to vector<384x128xbf16>
    %cst_12 = arith.constant dense<0.000000e+00> : vector<96x128xf32>
    %30 = tpu.matmul %27, %29, %cst_12 {dimension_numbers = #tpu.dot_dimension_numbers<[1], [0], [0], [1], [0, 0, 1, 1], [], []>} : vector<96x384xbf16>, vector<384x128xbf16>, vector<96x128xf32> -> vector<96x128xf32>
    %31 = arith.addf %21, %30 : vector<96x128xf32>
    %c0_13 = arith.constant 0 : index
    %c0_14 = arith.constant 0 : index
    %32 = vector.load %arg3[%c0_13, %c0_14] : memref<1x128xf32, #tpu.memory_space<vmem>>, vector<1x128xf32>
    %33 = vector.broadcast %32 : vector<1x128xf32> to vector<96x128xf32>
    %34 = arith.addf %31, %33 : vector<96x128xf32>
    %cst_15 = arith.constant 0.000000e+00 : f32
    %35 = vector.broadcast %cst_15 : f32 to vector<96x128xf32>
    %36 = arith.maximumf %34, %35 : vector<96x128xf32>
    %37 = vector.shape_cast %36 : vector<96x128xf32> to vector<2x6x8x128xf32>
    %38 = vector.shape_cast %37 : vector<2x6x8x128xf32> to vector<6x2x8x128xf32>
    %39 = vector.extract_strided_slice %38 {offsets = [0, 0, 0, 0], sizes = [6, 1, 8, 128], strides = [1, 1, 1, 1]} : vector<6x2x8x128xf32> to vector<6x1x8x128xf32>
    %40 = vector.shape_cast %39 : vector<6x1x8x128xf32> to vector<6x8x128xf32>
    %41 = vector.extract_strided_slice %38 {offsets = [0, 1, 0, 0], sizes = [6, 1, 8, 128], strides = [1, 1, 1, 1]} : vector<6x2x8x128xf32> to vector<6x1x8x128xf32>
    %42 = vector.shape_cast %41 : vector<6x1x8x128xf32> to vector<6x8x128xf32>
    %43 = arith.maximumf %40, %42 : vector<6x8x128xf32>
    %c0_16 = arith.constant 0 : index
    %c0_17 = arith.constant 0 : index
    %c0_18 = arith.constant 0 : index
    %44 = vector.load %arg5[%c0_16, %c0_17, %c0_18] : memref<6x8x128xf32, #tpu.memory_space<vmem>>, vector<6x8x128xf32>
    tpu.vector_store %arg5[%c0_16, %c0_17, %c0_18], %43 {strides = array<i32>} : memref<6x8x128xf32, #tpu.memory_space<vmem>>, vector<6x8x128xf32>,
    %c0_19 = arith.constant 0 : index
    %c0_20 = arith.constant 0 : index
    %c0_21 = arith.constant 0 : index
    %45 = tpu.strided_load %arg5[%c0_19, %c0_20, %c0_21] {strides = array<i32: 1, 2, 1>} : memref<6x8x128xf32, #tpu.memory_space<vmem>>, vector<6x3x128xf32>
    %c0_22 = arith.constant 0 : index
    %c1_23 = arith.constant 1 : index
    %c0_24 = arith.constant 0 : index
    %46 = tpu.strided_load %arg5[%c0_22, %c1_23, %c0_24] {strides = array<i32: 1, 2, 1>} : memref<6x8x128xf32, #tpu.memory_space<vmem>>, vector<6x3x128xf32>
    %47 = arith.maximumf %45, %46 : vector<6x3x128xf32>
    %48 = vector.shape_cast %47 : vector<6x3x128xf32> to vector<2x3x3x128xf32>
    %49 = arith.truncf %48 : vector<2x3x3x128xf32> to vector<2x3x3x128xbf16>
    %c0_25 = arith.constant 0 : index
    %c0_26 = arith.constant 0 : index
    %c0_27 = arith.constant 0 : index
    %c0_28 = arith.constant 0 : index
    %50 = vector.load %arg4[%c0_25, %c0_26, %c0_27, %c0_28] : memref<2x3x3x128xbf16, #tpu.memory_space<vmem>>, vector<2x3x3x128xbf16>
    tpu.vector_store %arg4[%c0_25, %c0_26, %c0_27, %c0_28], %49 {strides = array<i32>} : memref<2x3x3x128xbf16, #tpu.memory_space<vmem>>, vector<2x3x3x128xbf16>,
    return
  }
  func.func @transform_0(%arg0: i32) -> (i32, i32, i32, i32) {
    %c0_i32 = arith.constant 0 : i32
    %c0_i32_0 = arith.constant 0 : i32
    %c0_i32_1 = arith.constant 0 : i32
    %c0_i32_2 = arith.constant 0 : i32
    return %arg0, %c0_i32, %c0_i32_0, %c0_i32_1 : i32, i32, i32, i32
  }
  func.func @transform_1(%arg0: i32) -> (i32, i32, i32) {
    %c0_i32 = arith.constant 0 : i32
    %c0_i32_0 = arith.constant 0 : i32
    %c0_i32_1 = arith.constant 0 : i32
    %c0_i32_2 = arith.constant 0 : i32
    return %c0_i32, %c0_i32_0, %c0_i32_1 : i32, i32, i32
  }
  func.func @transform_2(%arg0: i32) -> (i32, i32) {
    %c0_i32 = arith.constant 0 : i32
    %c0_i32_0 = arith.constant 0 : i32
    %c0_i32_1 = arith.constant 0 : i32
    return %c0_i32, %c0_i32_0 : i32, i32
  }
  func.func @transform_3(%arg0: i32) -> (i32, i32, i32, i32) {
    %c0_i32 = arith.constant 0 : i32
    %c0_i32_0 = arith.constant 0 : i32
    %c0_i32_1 = arith.constant 0 : i32
    %c0_i32_2 = arith.constant 0 : i32
    return %arg0, %c0_i32, %c0_i32_0, %c0_i32_1 : i32, i32, i32, i32
  }
}

module attributes {stable_mosaic.version = 11 : i64} {
  func.func @_tail_kernel(%arg0: i32, %arg1: memref<2x3x3x128xbf16, #tpu.memory_space<vmem>>, %arg2: memref<128x256xbf16, #tpu.memory_space<vmem>>, %arg3: memref<1x256xf32, #tpu.memory_space<vmem>>, %arg4: memref<256x128xbf16, #tpu.memory_space<vmem>>, %arg5: memref<1x128xf32, #tpu.memory_space<vmem>>, %arg6: memref<2x128xf32, #tpu.memory_space<vmem>>) attributes {dimension_semantics = [#tpu.dimension_semantics<arbitrary>], iteration_bounds = array<i64: 1>, scalar_prefetch = 0 : i64, scratch_operands = 0 : i64, tpu.core_type = #tpu.core_type<tc>, window_params = [{pipeline_mode = #tpu.pipeline_mode<synchronous>, transform_indices = @transform_0, window_bounds = array<i64: 2, 3, 3, 128>}, {pipeline_mode = #tpu.pipeline_mode<synchronous>, transform_indices = @transform_1, window_bounds = array<i64: 128, 256>}, {pipeline_mode = #tpu.pipeline_mode<synchronous>, transform_indices = @transform_2, window_bounds = array<i64: 1, 256>}, {pipeline_mode = #tpu.pipeline_mode<synchronous>, transform_indices = @transform_3, window_bounds = array<i64: 256, 128>}, {pipeline_mode = #tpu.pipeline_mode<synchronous>, transform_indices = @transform_4, window_bounds = array<i64: 1, 128>}, {pipeline_mode = #tpu.pipeline_mode<synchronous>, transform_indices = @transform_5, window_bounds = array<i64: 2, 128>}]} {
    %c0 = arith.constant 0 : index
    %c0_0 = arith.constant 0 : index
    %c0_1 = arith.constant 0 : index
    %c0_2 = arith.constant 0 : index
    %0 = vector.load %arg1[%c0, %c0_0, %c0_1, %c0_2] : memref<2x3x3x128xbf16, #tpu.memory_space<vmem>>, vector<2x1x1x128xbf16>
    %1 = vector.shape_cast %0 : vector<2x1x1x128xbf16> to vector<2x128xbf16>
    %c0_3 = arith.constant 0 : index
    %c0_4 = arith.constant 0 : index
    %2 = vector.load %arg2[%c0_3, %c0_4] : memref<128x256xbf16, #tpu.memory_space<vmem>>, vector<128x256xbf16>
    %cst = arith.constant dense<0.000000e+00> : vector<2x256xf32>
    %3 = tpu.matmul %1, %2, %cst {dimension_numbers = #tpu.dot_dimension_numbers<[1], [0], [0], [1], [0, 0, 1, 1], [], []>} : vector<2x128xbf16>, vector<128x256xbf16>, vector<2x256xf32> -> vector<2x256xf32>
    %c0_5 = arith.constant 0 : index
    %c0_6 = arith.constant 0 : index
    %4 = vector.load %arg3[%c0_5, %c0_6] : memref<1x256xf32, #tpu.memory_space<vmem>>, vector<1x256xf32>
    %5 = vector.broadcast %4 : vector<1x256xf32> to vector<2x256xf32>
    %6 = arith.addf %3, %5 : vector<2x256xf32>
    %cst_7 = arith.constant 0.000000e+00 : f32
    %7 = vector.broadcast %cst_7 : f32 to vector<2x256xf32>
    %8 = arith.maximumf %6, %7 : vector<2x256xf32>
    %c0_8 = arith.constant 0 : index
    %c0_9 = arith.constant 0 : index
    %c1 = arith.constant 1 : index
    %c0_10 = arith.constant 0 : index
    %9 = vector.load %arg1[%c0_8, %c0_9, %c1, %c0_10] : memref<2x3x3x128xbf16, #tpu.memory_space<vmem>>, vector<2x1x1x128xbf16>
    %10 = vector.shape_cast %9 : vector<2x1x1x128xbf16> to vector<2x128xbf16>
    %c0_11 = arith.constant 0 : index
    %c0_12 = arith.constant 0 : index
    %11 = vector.load %arg2[%c0_11, %c0_12] : memref<128x256xbf16, #tpu.memory_space<vmem>>, vector<128x256xbf16>
    %cst_13 = arith.constant dense<0.000000e+00> : vector<2x256xf32>
    %12 = tpu.matmul %10, %11, %cst_13 {dimension_numbers = #tpu.dot_dimension_numbers<[1], [0], [0], [1], [0, 0, 1, 1], [], []>} : vector<2x128xbf16>, vector<128x256xbf16>, vector<2x256xf32> -> vector<2x256xf32>
    %c0_14 = arith.constant 0 : index
    %c0_15 = arith.constant 0 : index
    %13 = vector.load %arg3[%c0_14, %c0_15] : memref<1x256xf32, #tpu.memory_space<vmem>>, vector<1x256xf32>
    %14 = vector.broadcast %13 : vector<1x256xf32> to vector<2x256xf32>
    %15 = arith.addf %12, %14 : vector<2x256xf32>
    %cst_16 = arith.constant 0.000000e+00 : f32
    %16 = vector.broadcast %cst_16 : f32 to vector<2x256xf32>
    %17 = arith.maximumf %15, %16 : vector<2x256xf32>
    %18 = arith.maximumf %8, %17 : vector<2x256xf32>
    %c0_17 = arith.constant 0 : index
    %c1_18 = arith.constant 1 : index
    %c0_19 = arith.constant 0 : index
    %c0_20 = arith.constant 0 : index
    %19 = vector.load %arg1[%c0_17, %c1_18, %c0_19, %c0_20] : memref<2x3x3x128xbf16, #tpu.memory_space<vmem>>, vector<2x1x1x128xbf16>
    %20 = vector.shape_cast %19 : vector<2x1x1x128xbf16> to vector<2x128xbf16>
    %c0_21 = arith.constant 0 : index
    %c0_22 = arith.constant 0 : index
    %21 = vector.load %arg2[%c0_21, %c0_22] : memref<128x256xbf16, #tpu.memory_space<vmem>>, vector<128x256xbf16>
    %cst_23 = arith.constant dense<0.000000e+00> : vector<2x256xf32>
    %22 = tpu.matmul %20, %21, %cst_23 {dimension_numbers = #tpu.dot_dimension_numbers<[1], [0], [0], [1], [0, 0, 1, 1], [], []>} : vector<2x128xbf16>, vector<128x256xbf16>, vector<2x256xf32> -> vector<2x256xf32>
    %c0_24 = arith.constant 0 : index
    %c0_25 = arith.constant 0 : index
    %23 = vector.load %arg3[%c0_24, %c0_25] : memref<1x256xf32, #tpu.memory_space<vmem>>, vector<1x256xf32>
    %24 = vector.broadcast %23 : vector<1x256xf32> to vector<2x256xf32>
    %25 = arith.addf %22, %24 : vector<2x256xf32>
    %cst_26 = arith.constant 0.000000e+00 : f32
    %26 = vector.broadcast %cst_26 : f32 to vector<2x256xf32>
    %27 = arith.maximumf %25, %26 : vector<2x256xf32>
    %c0_27 = arith.constant 0 : index
    %c1_28 = arith.constant 1 : index
    %c1_29 = arith.constant 1 : index
    %c0_30 = arith.constant 0 : index
    %28 = vector.load %arg1[%c0_27, %c1_28, %c1_29, %c0_30] : memref<2x3x3x128xbf16, #tpu.memory_space<vmem>>, vector<2x1x1x128xbf16>
    %29 = vector.shape_cast %28 : vector<2x1x1x128xbf16> to vector<2x128xbf16>
    %c0_31 = arith.constant 0 : index
    %c0_32 = arith.constant 0 : index
    %30 = vector.load %arg2[%c0_31, %c0_32] : memref<128x256xbf16, #tpu.memory_space<vmem>>, vector<128x256xbf16>
    %cst_33 = arith.constant dense<0.000000e+00> : vector<2x256xf32>
    %31 = tpu.matmul %29, %30, %cst_33 {dimension_numbers = #tpu.dot_dimension_numbers<[1], [0], [0], [1], [0, 0, 1, 1], [], []>} : vector<2x128xbf16>, vector<128x256xbf16>, vector<2x256xf32> -> vector<2x256xf32>
    %c0_34 = arith.constant 0 : index
    %c0_35 = arith.constant 0 : index
    %32 = vector.load %arg3[%c0_34, %c0_35] : memref<1x256xf32, #tpu.memory_space<vmem>>, vector<1x256xf32>
    %33 = vector.broadcast %32 : vector<1x256xf32> to vector<2x256xf32>
    %34 = arith.addf %31, %33 : vector<2x256xf32>
    %cst_36 = arith.constant 0.000000e+00 : f32
    %35 = vector.broadcast %cst_36 : f32 to vector<2x256xf32>
    %36 = arith.maximumf %34, %35 : vector<2x256xf32>
    %37 = arith.maximumf %27, %36 : vector<2x256xf32>
    %38 = arith.maximumf %18, %37 : vector<2x256xf32>
    %39 = arith.truncf %38 : vector<2x256xf32> to vector<2x256xbf16>
    %c0_37 = arith.constant 0 : index
    %c0_38 = arith.constant 0 : index
    %40 = vector.load %arg4[%c0_37, %c0_38] : memref<256x128xbf16, #tpu.memory_space<vmem>>, vector<256x128xbf16>
    %cst_39 = arith.constant dense<0.000000e+00> : vector<2x128xf32>
    %41 = tpu.matmul %39, %40, %cst_39 {dimension_numbers = #tpu.dot_dimension_numbers<[1], [0], [0], [1], [0, 0, 1, 1], [], []>} : vector<2x256xbf16>, vector<256x128xbf16>, vector<2x128xf32> -> vector<2x128xf32>
    %c0_40 = arith.constant 0 : index
    %c0_41 = arith.constant 0 : index
    %42 = vector.load %arg5[%c0_40, %c0_41] : memref<1x128xf32, #tpu.memory_space<vmem>>, vector<1x128xf32>
    %43 = vector.broadcast %42 : vector<1x128xf32> to vector<2x128xf32>
    %44 = arith.addf %41, %43 : vector<2x128xf32>
    %c0_42 = arith.constant 0 : index
    %c0_43 = arith.constant 0 : index
    %45 = vector.load %arg6[%c0_42, %c0_43] : memref<2x128xf32, #tpu.memory_space<vmem>>, vector<2x128xf32>
    tpu.vector_store %arg6[%c0_42, %c0_43], %44 {strides = array<i32>} : memref<2x128xf32, #tpu.memory_space<vmem>>, vector<2x128xf32>,
    return
  }
  func.func @transform_0(%arg0: i32) -> (i32, i32, i32, i32) {
    %c0_i32 = arith.constant 0 : i32
    %c0_i32_0 = arith.constant 0 : i32
    %c0_i32_1 = arith.constant 0 : i32
    %c0_i32_2 = arith.constant 0 : i32
    %c0_i32_3 = arith.constant 0 : i32
    return %c0_i32, %c0_i32_0, %c0_i32_1, %c0_i32_2 : i32, i32, i32, i32
  }
  func.func @transform_1(%arg0: i32) -> (i32, i32) {
    %c0_i32 = arith.constant 0 : i32
    %c0_i32_0 = arith.constant 0 : i32
    %c0_i32_1 = arith.constant 0 : i32
    return %c0_i32, %c0_i32_0 : i32, i32
  }
  func.func @transform_2(%arg0: i32) -> (i32, i32) {
    %c0_i32 = arith.constant 0 : i32
    %c0_i32_0 = arith.constant 0 : i32
    %c0_i32_1 = arith.constant 0 : i32
    return %c0_i32, %c0_i32_0 : i32, i32
  }
  func.func @transform_3(%arg0: i32) -> (i32, i32) {
    %c0_i32 = arith.constant 0 : i32
    %c0_i32_0 = arith.constant 0 : i32
    %c0_i32_1 = arith.constant 0 : i32
    return %c0_i32, %c0_i32_0 : i32, i32
  }
  func.func @transform_4(%arg0: i32) -> (i32, i32) {
    %c0_i32 = arith.constant 0 : i32
    %c0_i32_0 = arith.constant 0 : i32
    %c0_i32_1 = arith.constant 0 : i32
    return %c0_i32, %c0_i32_0 : i32, i32
  }
  func.func @transform_5(%arg0: i32) -> (i32, i32) {
    %c0_i32 = arith.constant 0 : i32
    %c0_i32_0 = arith.constant 0 : i32
    %c0_i32_1 = arith.constant 0 : i32
    return %c0_i32, %c0_i32_0 : i32, i32
  }
}

</mosaic_0001>

<llo_original>
// kernel: cnn_forward.3
$region0: #{cnn_forward.3}
  #allocation0 [shape = 'u32[]', space=smem, size = 0x4, offset = 0x4, fixed_abs, tag = 'smem constant byte address 0x4 - core index']
  #allocation1 [shape = 'u32[72,128]{1,0:T(1,128)}', space=vmem, size = 0x9000, scoped, tag = 'internal scratch']
  #allocation2 [shape = 'f32[12,16,128]{2,1,0:T(8,128)}', space=vmem, size = 0x18000, scoped, tag = 'scratch operand']
  %s0 = inlined_call_operand.vmem [shape: bf16[2,12,16,128], index: 0, kind: input, shape index: {}]
  %s1 = inlined_call_operand.vmem [shape: bf16[1,128,128], index: 1, kind: input, shape index: {}]
  %s2 = inlined_call_operand.vmem [shape: f32[1,128], index: 2, kind: input, shape index: {}]
  %s3 = inlined_call_operand.vmem [shape: bf16[2,6,6,128], index: 3, kind: output, shape index: {}]
  %s4 = sld [smem:[#allocation0]]
  $region22: #{cnn_forward.3} parent=0
    _
  %s6 = ssub.s32 1, %s4
  %s7 = scalar_select 0, %s6, %s4
  // Predicated region
  $region2: #{cnn_forward.3} parent=0 // pred_check
    _
  $region3: #{cnn_forward.3} parent=0 // pred_check_branch
    %9 = sbr.rel (0) target = $region5
  $region4: #{cnn_forward.3} parent=0 // pred_region
    _
  $region5: #{cnn_forward.3} parent=0 // pred_fallthru
    _
  // Predicated region
  $region6: #{cnn_forward.3} parent=0 // pred_check
    _
  $region7: #{cnn_forward.3} parent=0 // pred_check_branch
    %11 = sbr.rel (0) target = $region9
  $region8: #{cnn_forward.3} parent=0 // pred_region
    _
  $region9: #{cnn_forward.3} parent=0 // pred_fallthru
    _
  // Predicated region
  $region10: #{cnn_forward.3} parent=0 // pred_check
    _
  $region11: #{cnn_forward.3} parent=0 // pred_check_branch
    %13 = sbr.rel (0) target = $region13
  $region12: #{cnn_forward.3} parent=0 // pred_region
    _
  $region13: #{cnn_forward.3} parent=0 // pred_fallthru
    _
  %v14 = vld [vmem:[%s0] sm:$0xf]
  %v15 = vld [vmem:[%s0 + $0x4] sm:$0xf]
  %v16 = vld [vmem:[%s0 + $0x8] sm:$0xf]
  %v17 = vld [vmem:[%s0 + $0xc] sm:$0xf]
  %v18 = vld [vmem:[%s0 + $0x10] sm:$0xf]
  %v19 = vld [vmem:[%s0 + $0x14] sm:$0xf]
  %v20 = vld [vmem:[%s0 + $0x18] sm:$0xf]
  %v21 = vld [vmem:[%s0 + $0x1c] sm:$0xf]
  %v22 = vld [vmem:[%s0 + $0x20] sm:$0xf]
  %v23 = vld [vmem:[%s0 + $0x24] sm:$0xf]
  %v24 = vld [vmem:[%s0 + $0x28] sm:$0xf]
  %v25 = vld [vmem:[%s0 + $0x2c] sm:$0xf]
  %v26 = vld [vmem:[%s0 + $0x30] sm:$0xf]
  %v27 = vld [vmem:[%s0 + $0x34] sm:$0xf]
  %v28 = vld [vmem:[%s0 + $0x38] sm:$0xf]
  %v29 = vld [vmem:[%s0 + $0x3c] sm:$0xf]
  %v30 = vld [vmem:[%s0 + $0x40] sm:$0xf]
  %v31 = vld [vmem:[%s0 + $0x44] sm:$0xf]
  %v32 = vld [vmem:[%s0 + $0x48] sm:$0xf]
  %v33 = vld [vmem:[%s0 + $0x4c] sm:$0xf]
  %v34 = vld [vmem:[%s0 + $0x50] sm:$0xf]
  %v35 = vld [vmem:[%s0 + $0x54] sm:$0xf]
  %v36 = vld [vmem:[%s0 + $0x58] sm:$0xf]
  %v37 = vld [vmem:[%s0 + $0x5c] sm:$0xf]
  %v38 = vld [vmem:[%s0 + $0x60] sm:$0xf]
  %v39 = vld [vmem:[%s0 + $0x64] sm:$0xf]
  %v40 = vld [vmem:[%s0 + $0x68] sm:$0xf]
  %v41 = vld [vmem:[%s0 + $0x6c] sm:$0xf]
  %v42 = vld [vmem:[%s0 + $0x70] sm:$0xf]
  %v43 = vld [vmem:[%s0 + $0x74] sm:$0xf]
  %v44 = vld [vmem:[%s0 + $0x78] sm:$0xf]
  %v45 = vld [vmem:[%s0 + $0x7c] sm:$0xf]
  %v46 = vld [vmem:[%s0 + $0x80] sm:$0xf]
  %v47 = vld [vmem:[%s0 + $0x84] sm:$0xf]
  %v48 = vld [vmem:[%s0 + $0x88] sm:$0xf]
  %v49 = vld [vmem:[%s0 + $0x8c] sm:$0xf]
  %v50 = vld [vmem:[%s0 + $0x90] sm:$0xf]
  %v51 = vld [vmem:[%s0 + $0x94] sm:$0xf]
  %v52 = vld [vmem:[%s0 + $0x98] sm:$0xf]
  %v53 = vld [vmem:[%s0 + $0x9c] sm:$0xf]
  %v54 = vld [vmem:[%s0 + $0xa0] sm:$0xf]
  %v55 = vld [vmem:[%s0 + $0xa4] sm:$0xf]
  %v56 = vld [vmem:[%s0 + $0xa8] sm:$0xf]
  %v57 = vld [vmem:[%s0 + $0xac] sm:$0xf]
  %v58 = vld [vmem:[%s0 + $0xb0] sm:$0xf]
  %v59 = vld [vmem:[%s0 + $0xb4] sm:$0xf]
  %v60 = vld [vmem:[%s0 + $0xb8] sm:$0xf]
  %v61 = vld [vmem:[%s0 + $0xbc] sm:$0xf]
  %v62 = vld [vmem:[%s1] sm:$0xf]
  %v63 = vld [vmem:[%s1 + $0x4] sm:$0xf]
  %v64 = vld [vmem:[%s1 + $0x8] sm:$0xf]
  %v65 = vld [vmem:[%s1 + $0xc] sm:$0xf]
  %v66 = vld [vmem:[%s1 + $0x10] sm:$0xf]
  %v67 = vld [vmem:[%s1 + $0x14] sm:$0xf]
  %v68 = vld [vmem:[%s1 + $0x18] sm:$0xf]
  %v69 = vld [vmem:[%s1 + $0x1c] sm:$0xf]
  %v70 = vld [vmem:[%s1 + $0x20] sm:$0xf]
  %v71 = vld [vmem:[%s1 + $0x24] sm:$0xf]
  %v72 = vld [vmem:[%s1 + $0x28] sm:$0xf]
  %v73 = vld [vmem:[%s1 + $0x2c] sm:$0xf]
  %v74 = vld [vmem:[%s1 + $0x30] sm:$0xf]
  %v75 = vld [vmem:[%s1 + $0x34] sm:$0xf]
  %v76 = vld [vmem:[%s1 + $0x38] sm:$0xf]
  %v77 = vld [vmem:[%s1 + $0x3c] sm:$0xf]
  %v78 = vld [vmem:[%s2] sm:$0x1]
  %v80 = vperm.slane %v78, 0
  %v130 = vunpack.c.l.b16 %v14
  %v131 = vunpack.c.l.b16 %v15
  %v132 = vunpack.c.l.b16 %v16
  %v133 = vunpack.c.l.b16 %v17
  %v134 = vunpack.c.l.b16 %v18
  %v135 = vunpack.c.l.b16 %v19
  %v136 = vunpack.c.l.b16 %v20
  %v137 = vunpack.c.l.b16 %v21
  %v138 = vunpack.c.l.b16 %v22
  %v139 = vunpack.c.l.b16 %v23
  %v140 = vunpack.c.l.b16 %v24
  %v141 = vunpack.c.l.b16 %v25
  %v142 = vunpack.c.l.b16 %v26
  %v143 = vunpack.c.l.b16 %v27
  %v144 = vunpack.c.l.b16 %v28
  %v145 = vunpack.c.l.b16 %v29
  %v146 = vunpack.c.l.b16 %v30
  %v147 = vunpack.c.l.b16 %v31
  %v148 = vunpack.c.l.b16 %v32
  %v149 = vunpack.c.l.b16 %v33
  %v150 = vunpack.c.l.b16 %v34
  %v151 = vunpack.c.l.b16 %v35
  %v152 = vunpack.c.l.b16 %v36
  %v153 = vunpack.c.l.b16 %v37
  %v154 = vunpack.c.l.b16 %v38
  %v155 = vunpack.c.l.b16 %v39
  %v156 = vunpack.c.l.b16 %v40
  %v157 = vunpack.c.l.b16 %v41
  %v158 = vunpack.c.l.b16 %v42
  %v159 = vunpack.c.l.b16 %v43
  %v160 = vunpack.c.l.b16 %v44
  %v161 = vunpack.c.l.b16 %v45
  %v162 = vunpack.c.l.b16 %v46
  %v163 = vunpack.c.l.b16 %v47
  %v164 = vunpack.c.l.b16 %v48
  %v165 = vunpack.c.l.b16 %v49
  %v166 = vunpack.c.l.b16 %v50
  %v167 = vunpack.c.l.b16 %v51
  %v168 = vunpack.c.l.b16 %v52
  %v169 = vunpack.c.l.b16 %v53
  %v170 = vunpack.c.l.b16 %v54
  %v171 = vunpack.c.l.b16 %v55
  %v172 = vunpack.c.l.b16 %v56
  %v173 = vunpack.c.l.b16 %v57
  %v174 = vunpack.c.l.b16 %v58
  %v175 = vunpack.c.l.b16 %v59
  %v176 = vunpack.c.l.b16 %v60
  %v177 = vunpack.c.l.b16 %v61
  %v178 = vpack.c.b16 %v131, %v130
  %v179 = vpack.c.b16 %v133, %v132
  %v180 = vpack.c.b16 %v135, %v134
  %v181 = vpack.c.b16 %v137, %v136
  %v182 = vpack.c.b16 %v139, %v138
  %v183 = vpack.c.b16 %v141, %v140
  %v184 = vpack.c.b16 %v143, %v142
  %v185 = vpack.c.b16 %v145, %v144
  %v186 = vpack.c.b16 %v147, %v146
  %v187 = vpack.c.b16 %v149, %v148
  %v188 = vpack.c.b16 %v151, %v150
  %v189 = vpack.c.b16 %v153, %v152
  %v190 = vpack.c.b16 %v155, %v154
  %v191 = vpack.c.b16 %v157, %v156
  %v192 = vpack.c.b16 %v159, %v158
  %v193 = vpack.c.b16 %v161, %v160
  %v194 = vpack.c.b16 %v163, %v162
  %v195 = vpack.c.b16 %v165, %v164
  %v196 = vpack.c.b16 %v167, %v166
  %v197 = vpack.c.b16 %v169, %v168
  %v198 = vpack.c.b16 %v171, %v170
  %v199 = vpack.c.b16 %v173, %v172
  %v200 = vpack.c.b16 %v175, %v174
  %v201 = vpack.c.b16 %v177, %v176
  %v242 = vunpack.c.l.b16 %v62
  %v243 = vunpack.c.l.b16 %v63
  %v244 = vunpack.c.l.b16 %v64
  %v245 = vunpack.c.l.b16 %v65
  %v246 = vunpack.c.l.b16 %v66
  %v247 = vunpack.c.l.b16 %v67
  %v248 = vunpack.c.l.b16 %v68
  %v249 = vunpack.c.l.b16 %v69
  %v250 = vunpack.c.l.b16 %v70
  %v251 = vunpack.c.l.b16 %v71
  %v252 = vunpack.c.l.b16 %v72
  %v253 = vunpack.c.l.b16 %v73
  %v254 = vunpack.c.l.b16 %v74
  %v255 = vunpack.c.l.b16 %v75
  %v256 = vunpack.c.l.b16 %v76
  %v257 = vunpack.c.l.b16 %v77
  %v258 = vpack.c.b16 %v243, %v242
  %v259 = vpack.c.b16 %v245, %v244
  %v260 = vpack.c.b16 %v247, %v246
  %v261 = vpack.c.b16 %v249, %v248
  %v262 = vpack.c.b16 %v251, %v250
  %v263 = vpack.c.b16 %v253, %v252
  %v264 = vpack.c.b16 %v255, %v254
  %v265 = vpack.c.b16 %v257, %v256
  %274 = vmatpush.bf16.msra.mxu0 %v265
  %275 = vmatpush.bf16.msra.mxu0 %v264
  %276 = vmatpush.bf16.msra.mxu0 %v263
  %277 = vmatpush.bf16.msra.mxu0 %v262
  %278 = vmatpush.bf16.msra.mxu0 %v261
  %279 = vmatpush.bf16.msra.mxu0 %v260
  %280 = vmatpush.bf16.msra.mxu0 %v259
  %281 = vmatpush.bf16.msra.mxu0 %v258
  %282 = vmatmul.bf16.gmra.mxu0 %v178
  %v283 = vpop.f32.mrf.mxu0
  %v284 = vadd.f32 %v80, %v283
  %v285 = vpop.f32.mrf.mxu0
  %v286 = vadd.f32 %v80, %v285
  %287 = vmatmul.bf16.gmra.mxu0 %v179
  %v288 = vpop.f32.mrf.mxu0
  %v289 = vadd.f32 %v80, %v288
  %v290 = vpop.f32.mrf.mxu0
  %v291 = vadd.f32 %v80, %v290
  %292 = vmatmul.bf16.gmra.mxu0 %v180
  %v293 = vpop.f32.mrf.mxu0
  %v294 = vadd.f32 %v80, %v293
  %v295 = vpop.f32.mrf.mxu0
  %v296 = vadd.f32 %v80, %v295
  %297 = vmatmul.bf16.gmra.mxu0 %v181
  %v298 = vpop.f32.mrf.mxu0
  %v299 = vadd.f32 %v80, %v298
  %v300 = vpop.f32.mrf.mxu0
  %v301 = vadd.f32 %v80, %v300
  %302 = vmatmul.bf16.gmra.mxu0 %v182
  %v303 = vpop.f32.mrf.mxu0
  %v304 = vadd.f32 %v80, %v303
  %v305 = vpop.f32.mrf.mxu0
  %v306 = vadd.f32 %v80, %v305
  %307 = vmatmul.bf16.gmra.mxu0 %v183
  %v308 = vpop.f32.mrf.mxu0
  %v309 = vadd.f32 %v80, %v308
  %v310 = vpop.f32.mrf.mxu0
  %v311 = vadd.f32 %v80, %v310
  %312 = vmatmul.bf16.gmra.mxu0 %v184
  %v313 = vpop.f32.mrf.mxu0
  %v314 = vadd.f32 %v80, %v313
  %v315 = vpop.f32.mrf.mxu0
  %v316 = vadd.f32 %v80, %v315
  %317 = vmatmul.bf16.gmra.mxu0 %v185
  %v318 = vpop.f32.mrf.mxu0
  %v319 = vadd.f32 %v80, %v318
  %v320 = vpop.f32.mrf.mxu0
  %v321 = vadd.f32 %v80, %v320
  %322 = vmatmul.bf16.gmra.mxu0 %v186
  %v323 = vpop.f32.mrf.mxu0
  %v324 = vadd.f32 %v80, %v323
  %v325 = vpop.f32.mrf.mxu0
  %v326 = vadd.f32 %v80, %v325
  %327 = vmatmul.bf16.gmra.mxu0 %v187
  %v328 = vpop.f32.mrf.mxu0
  %v329 = vadd.f32 %v80, %v328
  %v330 = vpop.f32.mrf.mxu0
  %v331 = vadd.f32 %v80, %v330
  %332 = vmatmul.bf16.gmra.mxu0 %v188
  %v333 = vpop.f32.mrf.mxu0
  %v334 = vadd.f32 %v80, %v333
  %v335 = vpop.f32.mrf.mxu0
  %v336 = vadd.f32 %v80, %v335
  %337 = vmatmul.bf16.gmra.mxu0 %v189
  %v338 = vpop.f32.mrf.mxu0
  %v339 = vadd.f32 %v80, %v338
  %v340 = vpop.f32.mrf.mxu0
  %v341 = vadd.f32 %v80, %v340
  %342 = vmatmul.bf16.gmra.mxu0 %v190
  %v343 = vpop.f32.mrf.mxu0
  %v344 = vadd.f32 %v80, %v343
  %v345 = vpop.f32.mrf.mxu0
  %v346 = vadd.f32 %v80, %v345
  %347 = vmatmul.bf16.gmra.mxu0 %v191
  %v348 = vpop.f32.mrf.mxu0
  %v349 = vadd.f32 %v80, %v348
  %v350 = vpop.f32.mrf.mxu0
  %v351 = vadd.f32 %v80, %v350
  %352 = vmatmul.bf16.gmra.mxu0 %v192
  %v353 = vpop.f32.mrf.mxu0
  %v354 = vadd.f32 %v80, %v353
  %v355 = vpop.f32.mrf.mxu0
  %v356 = vadd.f32 %v80, %v355
  %357 = vmatmul.bf16.gmra.mxu0 %v193
  %v358 = vpop.f32.mrf.mxu0
  %v359 = vadd.f32 %v80, %v358
  %v360 = vpop.f32.mrf.mxu0
  %v361 = vadd.f32 %v80, %v360
  %362 = vmatmul.bf16.gmra.mxu0 %v194
  %v363 = vpop.f32.mrf.mxu0
  %v364 = vadd.f32 %v80, %v363
  %v365 = vpop.f32.mrf.mxu0
  %v366 = vadd.f32 %v80, %v365
  %367 = vmatmul.bf16.gmra.mxu0 %v195
  %v368 = vpop.f32.mrf.mxu0
  %v369 = vadd.f32 %v80, %v368
  %v370 = vpop.f32.mrf.mxu0
  %v371 = vadd.f32 %v80, %v370
  %372 = vmatmul.bf16.gmra.mxu0 %v196
  %v373 = vpop.f32.mrf.mxu0
  %v374 = vadd.f32 %v80, %v373
  %v375 = vpop.f32.mrf.mxu0
  %v376 = vadd.f32 %v80, %v375
  %377 = vmatmul.bf16.gmra.mxu0 %v197
  %v378 = vpop.f32.mrf.mxu0
  %v379 = vadd.f32 %v80, %v378
  %v380 = vpop.f32.mrf.mxu0
  %v381 = vadd.f32 %v80, %v380
  %382 = vmatmul.bf16.gmra.mxu0 %v198
  %v383 = vpop.f32.mrf.mxu0
  %v384 = vadd.f32 %v80, %v383
  %v385 = vpop.f32.mrf.mxu0
  %v386 = vadd.f32 %v80, %v385
  %387 = vmatmul.bf16.gmra.mxu0 %v199
  %v388 = vpop.f32.mrf.mxu0
  %v389 = vadd.f32 %v80, %v388
  %v390 = vpop.f32.mrf.mxu0
  %v391 = vadd.f32 %v80, %v390
  %392 = vmatmul.bf16.gmra.mxu0 %v200
  %v393 = vpop.f32.mrf.mxu0
  %v394 = vadd.f32 %v80, %v393
  %v395 = vpop.f32.mrf.mxu0
  %v396 = vadd.f32 %v80, %v395
  %397 = vmatmul.bf16.gmra.mxu0 %v201
  %v398 = vpop.f32.mrf.mxu0
  %v399 = vadd.f32 %v80, %v398
  %v400 = vpop.f32.mrf.mxu0
  %v401 = vadd.f32 %v80, %v400
  %402 = vdwg.mxu0
  %v403 = vmax.f32 %v284, 0.0
  %v404 = vmax.f32 %v286, 0.0
  %v405 = vmax.f32 %v289, 0.0
  %v406 = vmax.f32 %v291, 0.0
  %v407 = vmax.f32 %v294, 0.0
  %v408 = vmax.f32 %v296, 0.0
  %v409 = vmax.f32 %v299, 0.0
  %v410 = vmax.f32 %v301, 0.0
  %v411 = vmax.f32 %v304, 0.0
  %v412 = vmax.f32 %v306, 0.0
  %v413 = vmax.f32 %v309, 0.0
  %v414 = vmax.f32 %v311, 0.0
  %v415 = vmax.f32 %v314, 0.0
  %v416 = vmax.f32 %v316, 0.0
  %v417 = vmax.f32 %v319, 0.0
  %v418 = vmax.f32 %v321, 0.0
  %v419 = vmax.f32 %v324, 0.0
  %v420 = vmax.f32 %v326, 0.0
  %v421 = vmax.f32 %v329, 0.0
  %v422 = vmax.f32 %v331, 0.0
  %v423 = vmax.f32 %v334, 0.0
  %v424 = vmax.f32 %v336, 0.0
  %v425 = vmax.f32 %v339, 0.0
  %v426 = vmax.f32 %v341, 0.0
  %v427 = vmax.f32 %v344, 0.0
  %v428 = vmax.f32 %v346, 0.0
  %v429 = vmax.f32 %v349, 0.0
  %v430 = vmax.f32 %v351, 0.0
  %v431 = vmax.f32 %v354, 0.0
  %v432 = vmax.f32 %v356, 0.0
  %v433 = vmax.f32 %v359, 0.0
  %v434 = vmax.f32 %v361, 0.0
  %v435 = vmax.f32 %v364, 0.0
  %v436 = vmax.f32 %v366, 0.0
  %v437 = vmax.f32 %v369, 0.0
  %v438 = vmax.f32 %v371, 0.0
  %v439 = vmax.f32 %v374, 0.0
  %v440 = vmax.f32 %v376, 0.0
  %v441 = vmax.f32 %v379, 0.0
  %v442 = vmax.f32 %v381, 0.0
  %v443 = vmax.f32 %v384, 0.0
  %v444 = vmax.f32 %v386, 0.0
  %v445 = vmax.f32 %v389, 0.0
  %v446 = vmax.f32 %v391, 0.0
  %v447 = vmax.f32 %v394, 0.0
  %v448 = vmax.f32 %v396, 0.0
  %v449 = vmax.f32 %v399, 0.0
  %v450 = vmax.f32 %v401, 0.0
  %v451 = vmax.f32 %v403, %v405
  %v452 = vmax.f32 %v404, %v406
  %v453 = vmax.f32 %v407, %v409
  %v454 = vmax.f32 %v408, %v410
  %v455 = vmax.f32 %v411, %v413
  %v456 = vmax.f32 %v412, %v414
  %v457 = vmax.f32 %v415, %v417
  %v458 = vmax.f32 %v416, %v418
  %v459 = vmax.f32 %v419, %v421
  %v460 = vmax.f32 %v420, %v422
  %v461 = vmax.f32 %v423, %v425
  %v462 = vmax.f32 %v424, %v426
  %v463 = vmax.f32 %v427, %v429
  %v464 = vmax.f32 %v428, %v430
  %v465 = vmax.f32 %v431, %v433
  %v466 = vmax.f32 %v432, %v434
  %v467 = vmax.f32 %v435, %v437
  %v468 = vmax.f32 %v436, %v438
  %v469 = vmax.f32 %v439, %v441
  %v470 = vmax.f32 %v440, %v442
  %v471 = vmax.f32 %v443, %v445
  %v472 = vmax.f32 %v444, %v446
  %v473 = vmax.f32 %v447, %v449
  %v474 = vmax.f32 %v448, %v450
  %475 = vst [vmem:[#allocation2] sm:$0xff] %v451
  %476 = vst [vmem:[#allocation2 + $0x8] sm:$0xff] %v452
  %477 = vst [vmem:[#allocation2 + $0x10] sm:$0xff] %v453
  %478 = vst [vmem:[#allocation2 + $0x18] sm:$0xff] %v454
  %479 = vst [vmem:[#allocation2 + $0x20] sm:$0xff] %v455
  %480 = vst [vmem:[#allocation2 + $0x28] sm:$0xff] %v456
  %481 = vst [vmem:[#allocation2 + $0x30] sm:$0xff] %v457
  %482 = vst [vmem:[#allocation2 + $0x38] sm:$0xff] %v458
  %483 = vst [vmem:[#allocation2 + $0x40] sm:$0xff] %v459
  %484 = vst [vmem:[#allocation2 + $0x48] sm:$0xff] %v460
  %485 = vst [vmem:[#allocation2 + $0x50] sm:$0xff] %v461
  %486 = vst [vmem:[#allocation2 + $0x58] sm:$0xff] %v462
  %487 = vst [vmem:[#allocation2 + $0x60] sm:$0xff] %v463
  %488 = vst [vmem:[#allocation2 + $0x68] sm:$0xff] %v464
  %489 = vst [vmem:[#allocation2 + $0x70] sm:$0xff] %v465
  %490 = vst [vmem:[#allocation2 + $0x78] sm:$0xff] %v466
  %491 = vst [vmem:[#allocation2 + $0x80] sm:$0xff] %v467
  %492 = vst [vmem:[#allocation2 + $0x88] sm:$0xff] %v468
  %493 = vst [vmem:[#allocation2 + $0x90] sm:$0xff] %v469
  %494 = vst [vmem:[#allocation2 + $0x98] sm:$0xff] %v470
  %495 = vst [vmem:[#allocation2 + $0xa0] sm:$0xff] %v471
  %496 = vst [vmem:[#allocation2 + $0xa8] sm:$0xff] %v472
  %497 = vst [vmem:[#allocation2 + $0xb0] sm:$0xff] %v473
  %498 = vst [vmem:[#allocation2 + $0xb8] sm:$0xff] %v474
  %v499 = vld [vmem:[#allocation2] ss:$2 sm:$0x3f]
  %s500 = scalar_lea.vmem [#allocation2], 16
  %v501 = vld [vmem:[%s500] ss:$2 sm:$0x3f]
  %s502 = scalar_lea.vmem [#allocation2], 32
  %v503 = vld [vmem:[%s502] ss:$2 sm:$0x3f]
  %s504 = scalar_lea.vmem [#allocation2], 48
  %v505 = vld [vmem:[%s504] ss:$2 sm:$0x3f]
  %s506 = scalar_lea.vmem [#allocation2], 64
  %v507 = vld [vmem:[%s506] ss:$2 sm:$0x3f]
  %s508 = scalar_lea.vmem [#allocation2], 80
  %v509 = vld [vmem:[%s508] ss:$2 sm:$0x3f]
  %s510 = scalar_lea.vmem [#allocation2], 96
  %v511 = vld [vmem:[%s510] ss:$2 sm:$0x3f]
  %s512 = scalar_lea.vmem [#allocation2], 112
  %v513 = vld [vmem:[%s512] ss:$2 sm:$0x3f]
  %s514 = scalar_lea.vmem [#allocation2], 128
  %v515 = vld [vmem:[%s514] ss:$2 sm:$0x3f]
  %s516 = scalar_lea.vmem [#allocation2], 144
  %v517 = vld [vmem:[%s516] ss:$2 sm:$0x3f]
  %s518 = scalar_lea.vmem [#allocation2], 160
  %v519 = vld [vmem:[%s518] ss:$2 sm:$0x3f]
  %s520 = scalar_lea.vmem [#allocation2], 176
  %v521 = vld [vmem:[%s520] ss:$2 sm:$0x3f]
  %s522 = scalar_lea.vmem [#allocation2], 1
  %v523 = vld [vmem:[%s522] ss:$2 sm:$0x3f]
  %s524 = scalar_lea.vmem [#allocation2], 17
  %v525 = vld [vmem:[%s524] ss:$2 sm:$0x3f]
  %s526 = scalar_lea.vmem [#allocation2], 33
  %v527 = vld [vmem:[%s526] ss:$2 sm:$0x3f]
  %s528 = scalar_lea.vmem [#allocation2], 49
  %v529 = vld [vmem:[%s528] ss:$2 sm:$0x3f]
  %s530 = scalar_lea.vmem [#allocation2], 65
  %v531 = vld [vmem:[%s530] ss:$2 sm:$0x3f]
  %s532 = scalar_lea.vmem [#allocation2], 81
  %v533 = vld [vmem:[%s532] ss:$2 sm:$0x3f]
  %s534 = scalar_lea.vmem [#allocation2], 97
  %v535 = vld [vmem:[%s534] ss:$2 sm:$0x3f]
  %s536 = scalar_lea.vmem [#allocation2], 113
  %v537 = vld [vmem:[%s536] ss:$2 sm:$0x3f]
  %s538 = scalar_lea.vmem [#allocation2], 129
  %v539 = vld [vmem:[%s538] ss:$2 sm:$0x3f]
  %s540 = scalar_lea.vmem [#allocation2], 145
  %v541 = vld [vmem:[%s540] ss:$2 sm:$0x3f]
  %s542 = scalar_lea.vmem [#allocation2], 161
  %v543 = vld [vmem:[%s542] ss:$2 sm:$0x3f]
  %s544 = scalar_lea.vmem [#allocation2], 177
  %v545 = vld [vmem:[%s544] ss:$2 sm:$0x3f]
  %v546 = vmax.f32 %v499, %v523
  %v547 = vmax.f32 %v501, %v525
  %v548 = vmax.f32 %v503, %v527
  %v549 = vmax.f32 %v505, %v529
  %v550 = vmax.f32 %v507, %v531
  %v551 = vmax.f32 %v509, %v533
  %v552 = vmax.f32 %v511, %v535
  %v553 = vmax.f32 %v513, %v537
  %v554 = vmax.f32 %v515, %v539
  %v555 = vmax.f32 %v517, %v541
  %v556 = vmax.f32 %v519, %v543
  %v557 = vmax.f32 %v521, %v545
  %v558 = vpack.c.bf16 %v546, %v546
  %v559 = vpack.c.bf16 %v547, %v547
  %v560 = vpack.c.bf16 %v548, %v548
  %v561 = vpack.c.bf16 %v549, %v549
  %v562 = vpack.c.bf16 %v550, %v550
  %v563 = vpack.c.bf16 %v551, %v551
  %v564 = vpack.c.bf16 %v552, %v552
  %v565 = vpack.c.bf16 %v553, %v553
  %v566 = vpack.c.bf16 %v554, %v554
  %v567 = vpack.c.bf16 %v555, %v555
  %v568 = vpack.c.bf16 %v556, %v556
  %v569 = vpack.c.bf16 %v557, %v557
  %570 = vst [vmem:[%s3] sm:$0x7] %v558
  %571 = vst [vmem:[%s3 + $0x4] sm:$0x7] %v559
  %572 = vst [vmem:[%s3 + $0x8] sm:$0x7] %v560
  %573 = vst [vmem:[%s3 + $0xc] sm:$0x7] %v561
  %574 = vst [vmem:[%s3 + $0x10] sm:$0x7] %v562
  %575 = vst [vmem:[%s3 + $0x14] sm:$0x7] %v563
  %576 = vst [vmem:[%s3 + $0x18] sm:$0x7] %v564
  %577 = vst [vmem:[%s3 + $0x1c] sm:$0x7] %v565
  %578 = vst [vmem:[%s3 + $0x20] sm:$0x7] %v566
  %579 = vst [vmem:[%s3 + $0x24] sm:$0x7] %v567
  %580 = vst [vmem:[%s3 + $0x28] sm:$0x7] %v568
  %581 = vst [vmem:[%s3 + $0x2c] sm:$0x7] %v569
  // Predicated region
  $region14: #{cnn_forward.3} parent=0 // pred_check
    _
  $region15: #{cnn_forward.3} parent=0 // pred_check_branch
    %583 = sbr.rel (0) target = $region17
  $region16: #{cnn_forward.3} parent=0 // pred_region
    _
  $region17: #{cnn_forward.3} parent=0 // pred_fallthru
    _
  // Predicated region
  $region18: #{cnn_forward.3} parent=0 // pred_check
    _
  $region19: #{cnn_forward.3} parent=0 // pred_check_branch
    %585 = sbr.rel (0) target = $region21
  $region20: #{cnn_forward.3} parent=0 // pred_region
    _
  $region21: #{cnn_forward.3} parent=0 // pred_fallthru
    _

// kernel: cnn_forward.5
$region0: #{cnn_forward.5}
  #allocation0 [shape = 'u32[]', space=smem, size = 0x4, offset = 0x4, fixed_abs, tag = 'smem constant byte address 0x4 - core index']
  #allocation1 [shape = 'u32[72,128]{1,0:T(1,128)}', space=vmem, size = 0x9000, scoped, tag = 'internal scratch']
  %s0 = inlined_call_operand.vmem [shape: bf16[2,3,3,128], index: 0, kind: input, shape index: {}]
  %s1 = inlined_call_operand.vmem [shape: bf16[128,256], index: 1, kind: input, shape index: {}]
  %s2 = inlined_call_operand.vmem [shape: f32[1,256], index: 2, kind: input, shape index: {}]
  %s3 = inlined_call_operand.vmem [shape: bf16[256,128], index: 3, kind: input, shape index: {}]
  %s4 = inlined_call_operand.vmem [shape: f32[1,128], index: 4, kind: input, shape index: {}]
  %s5 = inlined_call_operand.hbm [shape: f32[2,128], index: 5, kind: output, shape index: {}]
  %s6 = sld [smem:[#allocation0]]
  $region30: #{cnn_forward.5} parent=0
    _
  %s8 = ssub.s32 1, %s6
  %s9 = scalar_select 0, %s8, %s6
  $region1: #{cnn_forward.5} parent=0
    #allocation2 [shape = 'u8[1024]{0}', space=vmem, size = 0x400, scoped, tag = 'output window, operand 0, single buffered']
    #allocation3 [shape = 's32[1]{0}', space=sflag, size = 0x4, scoped, tag = 'scoped memory for cnn_forward.5']
    %10 = vsyncpa [#allocation3], 0
    // Predicated region
    $region2: #{cnn_forward.5} parent=1 // pred_check
      _
    $region3: #{cnn_forward.5} parent=1 // pred_check_branch
      %12 = sbr.rel (0) target = $region5
    $region4: #{cnn_forward.5} parent=1 // pred_region
      _
    $region5: #{cnn_forward.5} parent=1 // pred_fallthru
      _
    // Predicated region
    $region6: #{cnn_forward.5} parent=1 // pred_check
      _
    $region7: #{cnn_forward.5} parent=1 // pred_check_branch
      %14 = sbr.rel (0) target = $region9
    $region8: #{cnn_forward.5} parent=1 // pred_region
      _
    $region9: #{cnn_forward.5} parent=1 // pred_fallthru
      _
    // Predicated region
    $region10: #{cnn_forward.5} parent=1 // pred_check
      _
    $region11: #{cnn_forward.5} parent=1 // pred_check_branch
      %16 = sbr.rel (0) target = $region13
    $region12: #{cnn_forward.5} parent=1 // pred_region
      _
    $region13: #{cnn_forward.5} parent=1 // pred_fallthru
      _
    // Predicated region
    $region14: #{cnn_forward.5} parent=1 // pred_check
      _
    $region15: #{cnn_forward.5} parent=1 // pred_check_branch
      %18 = sbr.rel (0) target = $region17
    $region16: #{cnn_forward.5} parent=1 // pred_region
      _
    $region17: #{cnn_forward.5} parent=1 // pred_fallthru
      _
    // Predicated region
    $region18: #{cnn_forward.5} parent=1 // pred_check
      _
    $region19: #{cnn_forward.5} parent=1 // pred_check_branch
      %20 = sbr.rel (0) target = $region21
    $region20: #{cnn_forward.5} parent=1 // pred_region
      _
    $region21: #{cnn_forward.5} parent=1 // pred_fallthru
      _
    %v21 = vld [vmem:[%s0] sm:$0x1]
    %v22 = vld [vmem:[%s0 + $0x6] sm:$0x1]
    %v23 = vld [vmem:[%s1] sm:$0xff]
    %v24 = vld [vmem:[%s1 + $0x8] sm:$0xff]
    %v25 = vld [vmem:[%s1 + $0x10] sm:$0xff]
    %v26 = vld [vmem:[%s1 + $0x18] sm:$0xff]
    %v27 = vld [vmem:[%s1 + $0x20] sm:$0xff]
    %v28 = vld [vmem:[%s1 + $0x28] sm:$0xff]
    %v29 = vld [vmem:[%s1 + $0x30] sm:$0xff]
    %v30 = vld [vmem:[%s1 + $0x38] sm:$0xff]
    %v31 = vld [vmem:[%s1 + $0x40] sm:$0xff]
    %v32 = vld [vmem:[%s1 + $0x48] sm:$0xff]
    %v33 = vld [vmem:[%s1 + $0x50] sm:$0xff]
    %v34 = vld [vmem:[%s1 + $0x58] sm:$0xff]
    %v35 = vld [vmem:[%s1 + $0x60] sm:$0xff]
    %v36 = vld [vmem:[%s1 + $0x68] sm:$0xff]
    %v37 = vld [vmem:[%s1 + $0x70] sm:$0xff]
    %v38 = vld [vmem:[%s1 + $0x78] sm:$0xff]
    %v39 = vld [vmem:[%s2] sm:$0x3]
    %v41 = vperm.slane %v39, 0
    %v42 = vperm.slane %v39, 1
    %46 = vst [vmem:[#allocation1] ss:$4 sm:$0xff] %v21
    %v47 = vld.sshfl [vmem:[#allocation1] sm:$0xff pattern:$0x73625140]
    %s50 = scalar_lea.vmem [#allocation1], 32
    %51 = vst [vmem:[%s50] ss:$4 sm:$0xff] %v22
    %v52 = vld.sshfl [vmem:[#allocation1 + $0x20] sm:$0xff pattern:$0x73625140]
    %v54 = vunpack.c.l.b16 %v47
    %v55 = vunpack.c.l.b16 %v52
    %v56 = vrot.slane %v55, 7
    %vm57 = vcmask 1041409
    %v58 = vsel %vm57, %v56, %v54
    %v59 = vpack.c.b16 %v58, %v58
    %v77 = vunpack.c.l.b16 %v23
    %v78 = vunpack.c.h.b16 %v23
    %v79 = vunpack.c.l.b16 %v24
    %v80 = vunpack.c.h.b16 %v24
    %v81 = vunpack.c.l.b16 %v25
    %v82 = vunpack.c.h.b16 %v25
    %v83 = vunpack.c.l.b16 %v26
    %v84 = vunpack.c.h.b16 %v26
    %v85 = vunpack.c.l.b16 %v27
    %v86 = vunpack.c.h.b16 %v27
    %v87 = vunpack.c.l.b16 %v28
    %v88 = vunpack.c.h.b16 %v28
    %v89 = vunpack.c.l.b16 %v29
    %v90 = vunpack.c.h.b16 %v29
    %v91 = vunpack.c.l.b16 %v30
    %v92 = vunpack.c.h.b16 %v30
    %v93 = vunpack.c.l.b16 %v31
    %v94 = vunpack.c.h.b16 %v31
    %v95 = vunpack.c.l.b16 %v32
    %v96 = vunpack.c.h.b16 %v32
    %v97 = vunpack.c.l.b16 %v33
    %v98 = vunpack.c.h.b16 %v33
    %v99 = vunpack.c.l.b16 %v34
    %v100 = vunpack.c.h.b16 %v34
    %v101 = vunpack.c.l.b16 %v35
    %v102 = vunpack.c.h.b16 %v35
    %v103 = vunpack.c.l.b16 %v36
    %v104 = vunpack.c.h.b16 %v36
    %v105 = vunpack.c.l.b16 %v37
    %v106 = vunpack.c.h.b16 %v37
    %v107 = vunpack.c.l.b16 %v38
    %v108 = vunpack.c.h.b16 %v38
    %v109 = vpack.c.b16 %v79, %v77
    %v110 = vpack.c.b16 %v80, %v78
    %v111 = vpack.c.b16 %v83, %v81
    %v112 = vpack.c.b16 %v84, %v82
    %v113 = vpack.c.b16 %v87, %v85
    %v114 = vpack.c.b16 %v88, %v86
    %v115 = vpack.c.b16 %v91, %v89
    %v116 = vpack.c.b16 %v92, %v90
    %v117 = vpack.c.b16 %v95, %v93
    %v118 = vpack.c.b16 %v96, %v94
    %v119 = vpack.c.b16 %v99, %v97
    %v120 = vpack.c.b16 %v100, %v98
    %v121 = vpack.c.b16 %v103, %v101
    %v122 = vpack.c.b16 %v104, %v102
    %v123 = vpack.c.b16 %v107, %v105
    %v124 = vpack.c.b16 %v108, %v106
    %141 = vmatpush.bf16.msra.mxu0 %v123
    %142 = vmatpush.bf16.msra.mxu0 %v121
    %143 = vmatpush.bf16.msra.mxu0 %v119
    %144 = vmatpush.bf16.msra.mxu0 %v117
    %145 = vmatpush.bf16.msra.mxu0 %v115
    %146 = vmatpush.bf16.msra.mxu0 %v113
    %147 = vmatpush.bf16.msra.mxu0 %v111
    %148 = vmatpush.bf16.msra.mxu0 %v109
    %149 = vmatmul.bf16.gmra.mxu0 %v59
    %v150 = vpop.f32.mrf.mxu0
    %v151 = vadd.f32 %v41, %v150
    %v152 = vpop.f32.mrf.mxu0
    %153 = vdwg.mxu0
    %154 = vmatpush.bf16.msra.mxu0 %v124
    %155 = vmatpush.bf16.msra.mxu0 %v122
    %156 = vmatpush.bf16.msra.mxu0 %v120
    %157 = vmatpush.bf16.msra.mxu0 %v118
    %158 = vmatpush.bf16.msra.mxu0 %v116
    %159 = vmatpush.bf16.msra.mxu0 %v114
    %160 = vmatpush.bf16.msra.mxu0 %v112
    %161 = vmatpush.bf16.msra.mxu0 %v110
    %162 = vmatmul.bf16.gmra.mxu0 %v59
    %v163 = vpop.f32.mrf.mxu0
    %v164 = vadd.f32 %v42, %v163
    %v165 = vpop.f32.mrf.mxu0
    %166 = vdwg.mxu0
    %v167 = vmax.f32 %v151, 0.0
    %v168 = vmax.f32 %v164, 0.0
    %v169 = vld [vmem:[%s0] sm:$0x1]
    %v170 = vld [vmem:[%s0 + $0x6] sm:$0x1]
    %172 = vst [vmem:[#allocation1] ss:$4 sm:$0xff] %v169
    %v173 = vld.sshfl [vmem:[#allocation1] sm:$0xff pattern:$0x73625140]
    %s176 = scalar_lea.vmem [#allocation1], 32
    %177 = vst [vmem:[%s176] ss:$4 sm:$0xff] %v170
    %v178 = vld.sshfl [vmem:[#allocation1 + $0x20] sm:$0xff pattern:$0x73625140]
    %v180 = vunpack.c.l.b16 %v173
    %v181 = vunpack.c.l.b16 %v178
    %v182 = vrot.slane %v180, 1
    %v183 = vsel %vm57, %v181, %v182
    %v184 = vpack.c.b16 %v183, %v183
    %186 = vmatpush.bf16.msra.mxu0 %v123
    %187 = vmatpush.bf16.msra.mxu0 %v121
    %188 = vmatpush.bf16.msra.mxu0 %v119
    %189 = vmatpush.bf16.msra.mxu0 %v117
    %190 = vmatpush.bf16.msra.mxu0 %v115
    %191 = vmatpush.bf16.msra.mxu0 %v113
    %192 = vmatpush.bf16.msra.mxu0 %v111
    %193 = vmatpush.bf16.msra.mxu0 %v109
    %194 = vmatmul.bf16.gmra.mxu0 %v184
    %v195 = vpop.f32.mrf.mxu0
    %v196 = vadd.f32 %v41, %v195
    %v197 = vpop.f32.mrf.mxu0
    %198 = vdwg.mxu0
    %199 = vmatpush.bf16.msra.mxu0 %v124
    %200 = vmatpush.bf16.msra.mxu0 %v122
    %201 = vmatpush.bf16.msra.mxu0 %v120
    %202 = vmatpush.bf16.msra.mxu0 %v118
    %203 = vmatpush.bf16.msra.mxu0 %v116
    %204 = vmatpush.bf16.msra.mxu0 %v114
    %205 = vmatpush.bf16.msra.mxu0 %v112
    %206 = vmatpush.bf16.msra.mxu0 %v110
    %207 = vmatmul.bf16.gmra.mxu0 %v184
    %v208 = vpop.f32.mrf.mxu0
    %v209 = vadd.f32 %v42, %v208
    %v210 = vpop.f32.mrf.mxu0
    %211 = vdwg.mxu0
    %v212 = vmax.f32 %v196, 0.0
    %v213 = vmax.f32 %v209, 0.0
    %v214 = vmax.f32 %v167, %v212
    %v215 = vmax.f32 %v168, %v213
    %s216 = scalar_lea.vmem %s0, 2
    %v217 = vld [vmem:[%s216] sm:$0x1]
    %v218 = vld [vmem:[%s216 + $0x6] sm:$0x1]
    %220 = vst [vmem:[#allocation1] ss:$4 sm:$0xff] %v217
    %v221 = vld.sshfl [vmem:[#allocation1] sm:$0xff pattern:$0x73625140]
    %s224 = scalar_lea.vmem [#allocation1], 32
    %225 = vst [vmem:[%s224] ss:$4 sm:$0xff] %v218
    %v226 = vld.sshfl [vmem:[#allocation1 + $0x20] sm:$0xff pattern:$0x73625140]
    %v228 = vunpack.c.l.b16 %v221
    %v229 = vunpack.c.l.b16 %v226
    %v230 = vrot.slane %v229, 7
    %v231 = vsel %vm57, %v230, %v228
    %v232 = vpack.c.b16 %v231, %v231
    %234 = vmatpush.bf16.msra.mxu0 %v123
    %235 = vmatpush.bf16.msra.mxu0 %v121
    %236 = vmatpush.bf16.msra.mxu0 %v119
    %237 = vmatpush.bf16.msra.mxu0 %v117
    %238 = vmatpush.bf16.msra.mxu0 %v115
    %239 = vmatpush.bf16.msra.mxu0 %v113
    %240 = vmatpush.bf16.msra.mxu0 %v111
    %241 = vmatpush.bf16.msra.mxu0 %v109
    %242 = vmatmul.bf16.gmra.mxu0 %v232
    %v243 = vpop.f32.mrf.mxu0
    %v244 = vadd.f32 %v41, %v243
    %v245 = vpop.f32.mrf.mxu0
    %246 = vdwg.mxu0
    %247 = vmatpush.bf16.msra.mxu0 %v124
    %248 = vmatpush.bf16.msra.mxu0 %v122
    %249 = vmatpush.bf16.msra.mxu0 %v120
    %250 = vmatpush.bf16.msra.mxu0 %v118
    %251 = vmatpush.bf16.msra.mxu0 %v116
    %252 = vmatpush.bf16.msra.mxu0 %v114
    %253 = vmatpush.bf16.msra.mxu0 %v112
    %254 = vmatpush.bf16.msra.mxu0 %v110
    %255 = vmatmul.bf16.gmra.mxu0 %v232
    %v256 = vpop.f32.mrf.mxu0
    %v257 = vadd.f32 %v42, %v256
    %v258 = vpop.f32.mrf.mxu0
    %259 = vdwg.mxu0
    %v260 = vmax.f32 %v244, 0.0
    %v261 = vmax.f32 %v257, 0.0
    %v262 = vld [vmem:[%s216] sm:$0x1]
    %v263 = vld [vmem:[%s216 + $0x6] sm:$0x1]
    %265 = vst [vmem:[#allocation1] ss:$4 sm:$0xff] %v262
    %v266 = vld.sshfl [vmem:[#allocation1] sm:$0xff pattern:$0x73625140]
    %s269 = scalar_lea.vmem [#allocation1], 32
    %270 = vst [vmem:[%s269] ss:$4 sm:$0xff] %v263
    %v271 = vld.sshfl [vmem:[#allocation1 + $0x20] sm:$0xff pattern:$0x73625140]
    %v273 = vunpack.c.l.b16 %v266
    %v274 = vunpack.c.l.b16 %v271
    %v275 = vrot.slane %v273, 1
    %v276 = vsel %vm57, %v274, %v275
    %v277 = vpack.c.b16 %v276, %v276
    %279 = vmatpush.bf16.msra.mxu0 %v123
    %280 = vmatpush.bf16.msra.mxu0 %v121
    %281 = vmatpush.bf16.msra.mxu0 %v119
    %282 = vmatpush.bf16.msra.mxu0 %v117
    %283 = vmatpush.bf16.msra.mxu0 %v115
    %284 = vmatpush.bf16.msra.mxu0 %v113
    %285 = vmatpush.bf16.msra.mxu0 %v111
    %286 = vmatpush.bf16.msra.mxu0 %v109
    %287 = vmatmul.bf16.gmra.mxu0 %v277
    %v288 = vpop.f32.mrf.mxu0
    %v289 = vadd.f32 %v41, %v288
    %v290 = vpop.f32.mrf.mxu0
    %291 = vdwg.mxu0
    %292 = vmatpush.bf16.msra.mxu0 %v124
    %293 = vmatpush.bf16.msra.mxu0 %v122
    %294 = vmatpush.bf16.msra.mxu0 %v120
    %295 = vmatpush.bf16.msra.mxu0 %v118
    %296 = vmatpush.bf16.msra.mxu0 %v116
    %297 = vmatpush.bf16.msra.mxu0 %v114
    %298 = vmatpush.bf16.msra.mxu0 %v112
    %299 = vmatpush.bf16.msra.mxu0 %v110
    %300 = vmatmul.bf16.gmra.mxu0 %v277
    %v301 = vpop.f32.mrf.mxu0
    %v302 = vadd.f32 %v42, %v301
    %v303 = vpop.f32.mrf.mxu0
    %304 = vdwg.mxu0
    %v305 = vmax.f32 %v289, 0.0
    %v306 = vmax.f32 %v302, 0.0
    %v307 = vmax.f32 %v260, %v305
    %v308 = vmax.f32 %v261, %v306
    %v309 = vmax.f32 %v214, %v307
    %v310 = vmax.f32 %v215, %v308
    %v311 = vpack.c.bf16 %v309, %v309
    %v312 = vpack.c.bf16 %v310, %v310
    %v313 = vld [vmem:[%s3] sm:$0xf]
    %v314 = vld [vmem:[%s3 + $0x4] sm:$0xf]
    %v315 = vld [vmem:[%s3 + $0x8] sm:$0xf]
    %v316 = vld [vmem:[%s3 + $0xc] sm:$0xf]
    %v317 = vld [vmem:[%s3 + $0x10] sm:$0xf]
    %v318 = vld [vmem:[%s3 + $0x14] sm:$0xf]
    %v319 = vld [vmem:[%s3 + $0x18] sm:$0xf]
    %v320 = vld [vmem:[%s3 + $0x1c] sm:$0xf]
    %v321 = vld [vmem:[%s3 + $0x20] sm:$0xf]
    %v322 = vld [vmem:[%s3 + $0x24] sm:$0xf]
    %v323 = vld [vmem:[%s3 + $0x28] sm:$0xf]
    %v324 = vld [vmem:[%s3 + $0x2c] sm:$0xf]
    %v325 = vld [vmem:[%s3 + $0x30] sm:$0xf]
    %v326 = vld [vmem:[%s3 + $0x34] sm:$0xf]
    %v327 = vld [vmem:[%s3 + $0x38] sm:$0xf]
    %v328 = vld [vmem:[%s3 + $0x3c] sm:$0xf]
    %v329 = vld [vmem:[%s3 + $0x40] sm:$0xf]
    %v330 = vld [vmem:[%s3 + $0x44] sm:$0xf]
    %v331 = vld [vmem:[%s3 + $0x48] sm:$0xf]
    %v332 = vld [vmem:[%s3 + $0x4c] sm:$0xf]
    %v333 = vld [vmem:[%s3 + $0x50] sm:$0xf]
    %v334 = vld [vmem:[%s3 + $0x54] sm:$0xf]
    %v335 = vld [vmem:[%s3 + $0x58] sm:$0xf]
    %v336 = vld [vmem:[%s3 + $0x5c] sm:$0xf]
    %v337 = vld [vmem:[%s3 + $0x60] sm:$0xf]
    %v338 = vld [vmem:[%s3 + $0x64] sm:$0xf]
    %v339 = vld [vmem:[%s3 + $0x68] sm:$0xf]
    %v340 = vld [vmem:[%s3 + $0x6c] sm:$0xf]
    %v341 = vld [vmem:[%s3 + $0x70] sm:$0xf]
    %v342 = vld [vmem:[%s3 + $0x74] sm:$0xf]
    %v343 = vld [vmem:[%s3 + $0x78] sm:$0xf]
    %v344 = vld [vmem:[%s3 + $0x7c] sm:$0xf]
    %v345 = vld [vmem:[%s4] sm:$0x1]
    %v347 = vperm.slane %v345, 0
    %v381 = vunpack.c.l.b16 %v313
    %v382 = vunpack.c.l.b16 %v314
    %v383 = vunpack.c.l.b16 %v315
    %v384 = vunpack.c.l.b16 %v316
    %v385 = vunpack.c.l.b16 %v317
    %v386 = vunpack.c.l.b16 %v318
    %v387 = vunpack.c.l.b16 %v319
    %v388 = vunpack.c.l.b16 %v320
    %v389 = vunpack.c.l.b16 %v321
    %v390 = vunpack.c.l.b16 %v322
    %v391 = vunpack.c.l.b16 %v323
    %v392 = vunpack.c.l.b16 %v324
    %v393 = vunpack.c.l.b16 %v325
    %v394 = vunpack.c.l.b16 %v326
    %v395 = vunpack.c.l.b16 %v327
    %v396 = vunpack.c.l.b16 %v328
    %v397 = vunpack.c.l.b16 %v329
    %v398 = vunpack.c.l.b16 %v330
    %v399 = vunpack.c.l.b16 %v331
    %v400 = vunpack.c.l.b16 %v332
    %v401 = vunpack.c.l.b16 %v333
    %v402 = vunpack.c.l.b16 %v334
    %v403 = vunpack.c.l.b16 %v335
    %v404 = vunpack.c.l.b16 %v336
    %v405 = vunpack.c.l.b16 %v337
    %v406 = vunpack.c.l.b16 %v338
    %v407 = vunpack.c.l.b16 %v339
    %v408 = vunpack.c.l.b16 %v340
    %v409 = vunpack.c.l.b16 %v341
    %v410 = vunpack.c.l.b16 %v342
    %v411 = vunpack.c.l.b16 %v343
    %v412 = vunpack.c.l.b16 %v344
    %v413 = vpack.c.b16 %v382, %v381
    %v414 = vpack.c.b16 %v384, %v383
    %v415 = vpack.c.b16 %v386, %v385
    %v416 = vpack.c.b16 %v388, %v387
    %v417 = vpack.c.b16 %v390, %v389
    %v418 = vpack.c.b16 %v392, %v391
    %v419 = vpack.c.b16 %v394, %v393
    %v420 = vpack.c.b16 %v396, %v395
    %v421 = vpack.c.b16 %v398, %v397
    %v422 = vpack.c.b16 %v400, %v399
    %v423 = vpack.c.b16 %v402, %v401
    %v424 = vpack.c.b16 %v404, %v403
    %v425 = vpack.c.b16 %v406, %v405
    %v426 = vpack.c.b16 %v408, %v407
    %v427 = vpack.c.b16 %v410, %v409
    %v428 = vpack.c.b16 %v412, %v411
    %445 = vmatpush.bf16.msra.mxu0 %v420
    %446 = vmatpush.bf16.msra.mxu0 %v419
    %447 = vmatpush.bf16.msra.mxu0 %v418
    %448 = vmatpush.bf16.msra.mxu0 %v417
    %449 = vmatpush.bf16.msra.mxu0 %v416
    %450 = vmatpush.bf16.msra.mxu0 %v415
    %451 = vmatpush.bf16.msra.mxu0 %v414
    %452 = vmatpush.bf16.msra.mxu0 %v413
    %453 = vmatmul.bf16.gmra.mxu0 %v311
    %v454 = vpop.f32.mrf.mxu0
    %v455 = vadd.f32 %v347, %v454
    %v456 = vpop.f32.mrf.mxu0
    %457 = vdwg.mxu0
    %458 = vmatpush.bf16.msra.mxu0 %v428
    %459 = vmatpush.bf16.msra.mxu0 %v427
    %460 = vmatpush.bf16.msra.mxu0 %v426
    %461 = vmatpush.bf16.msra.mxu0 %v425
    %462 = vmatpush.bf16.msra.mxu0 %v424
    %463 = vmatpush.bf16.msra.mxu0 %v423
    %464 = vmatpush.bf16.msra.mxu0 %v422
    %465 = vmatpush.bf16.msra.mxu0 %v421
    %466 = vmatmul.bf16.gmra.mxu0 %v312
    %v467 = vpop.f32.mrf.mxu0
    %v468 = vadd.f32 %v455, %v467
    %v469 = vpop.f32.mrf.mxu0
    %470 = vdwg.mxu0
    %471 = vst [vmem:[#allocation2] sm:$0x3] %v468
    // Predicated region
    $region22: #{cnn_forward.5} parent=1 // pred_check
      _
    $region23: #{cnn_forward.5} parent=1 // pred_check_branch
      %473 = sbr.rel (0) target = $region25
    $region24: #{cnn_forward.5} parent=1 // pred_region
      %475 = vsyncadd [#allocation3], 0
      %s477 = sshll.u32 [#allocation2], 4
      %s478 = int_to_ptr.vmem [resolvable:$true] %s477
      %s479 = sshll.u32 %s5, 4
      %s480 = int_to_ptr.hbm [resolvable:$true] %s479
      %482 = dma.vmem_to_hbm [thread:$0]  %s478, 32, %s480, [#allocation3]
    $region25: #{cnn_forward.5} parent=1 // pred_fallthru
      _
    // Predicated region
    $region26: #{cnn_forward.5} parent=1 // pred_check
      _
    $region27: #{cnn_forward.5} parent=1 // pred_check_branch
      %484 = sbr.rel (0) target = $region29
    $region28: #{cnn_forward.5} parent=1 // pred_region
      %486 = dma.done [#allocation3], 32
    $region29: #{cnn_forward.5} parent=1 // pred_fallthru
      _
    %487 = vsyncpa [#allocation3], 1

// kernel: cnn_forward.4
$region0: #{cnn_forward.4}
  #allocation0 [shape = 'u32[]', space=smem, size = 0x4, offset = 0x4, fixed_abs, tag = 'smem constant byte address 0x4 - core index']
  #allocation1 [shape = 'u32[72,128]{1,0:T(1,128)}', space=vmem, size = 0x9000, scoped, tag = 'internal scratch']
  #allocation2 [shape = 'f32[6,8,128]{2,1,0:T(8,128)}', space=vmem, size = 0x6000, scoped, tag = 'scratch operand']
  %s0 = inlined_call_operand.vmem [shape: bf16[2,8,10,128], index: 0, kind: input, shape index: {}]
  %s1 = inlined_call_operand.vmem [shape: bf16[3,384,128], index: 1, kind: input, shape index: {}]
  %s2 = inlined_call_operand.vmem [shape: f32[1,128], index: 2, kind: input, shape index: {}]
  %s3 = inlined_call_operand.vmem [shape: bf16[2,3,3,128], index: 3, kind: output, shape index: {}]
  %s4 = sld [smem:[#allocation0]]
  $region22: #{cnn_forward.4} parent=0
    _
  %s6 = ssub.s32 1, %s4
  %s7 = scalar_select 0, %s6, %s4
  // Predicated region
  $region2: #{cnn_forward.4} parent=0 // pred_check
    _
  $region3: #{cnn_forward.4} parent=0 // pred_check_branch
    %9 = sbr.rel (0) target = $region5
  $region4: #{cnn_forward.4} parent=0 // pred_region
    _
  $region5: #{cnn_forward.4} parent=0 // pred_fallthru
    _
  // Predicated region
  $region6: #{cnn_forward.4} parent=0 // pred_check
    _
  $region7: #{cnn_forward.4} parent=0 // pred_check_branch
    %11 = sbr.rel (0) target = $region9
  $region8: #{cnn_forward.4} parent=0 // pred_region
    _
  $region9: #{cnn_forward.4} parent=0 // pred_fallthru
    _
  // Predicated region
  $region10: #{cnn_forward.4} parent=0 // pred_check
    _
  $region11: #{cnn_forward.4} parent=0 // pred_check_branch
    %13 = sbr.rel (0) target = $region13
  $region12: #{cnn_forward.4} parent=0 // pred_region
    _
  $region13: #{cnn_forward.4} parent=0 // pred_fallthru
    _
  %v14 = vld [vmem:[%s0] sm:$0xf]
  %v15 = vld [vmem:[%s0 + $0x4] sm:$0x1]
  %v16 = vld [vmem:[%s0 + $0x8] sm:$0xf]
  %v17 = vld [vmem:[%s0 + $0xc] sm:$0x1]
  %v18 = vld [vmem:[%s0 + $0x10] sm:$0xf]
  %v19 = vld [vmem:[%s0 + $0x14] sm:$0x1]
  %v20 = vld [vmem:[%s0 + $0x18] sm:$0xf]
  %v21 = vld [vmem:[%s0 + $0x1c] sm:$0x1]
  %v22 = vld [vmem:[%s0 + $0x20] sm:$0xf]
  %v23 = vld [vmem:[%s0 + $0x24] sm:$0x1]
  %v24 = vld [vmem:[%s0 + $0x28] sm:$0xf]
  %v25 = vld [vmem:[%s0 + $0x2c] sm:$0x1]
  %v26 = vld [vmem:[%s0 + $0x30] sm:$0xf]
  %v27 = vld [vmem:[%s0 + $0x34] sm:$0x1]
  %v28 = vld [vmem:[%s0 + $0x38] sm:$0xf]
  %v29 = vld [vmem:[%s0 + $0x3c] sm:$0x1]
  %v30 = vld [vmem:[%s0 + $0x40] sm:$0xf]
  %v31 = vld [vmem:[%s0 + $0x44] sm:$0x1]
  %v32 = vld [vmem:[%s0 + $0x48] sm:$0xf]
  %v33 = vld [vmem:[%s0 + $0x4c] sm:$0x1]
  %v34 = vld [vmem:[%s0 + $0x50] sm:$0xf]
  %v35 = vld [vmem:[%s0 + $0x54] sm:$0x1]
  %v36 = vld [vmem:[%s0 + $0x58] sm:$0xf]
  %v37 = vld [vmem:[%s0 + $0x5c] sm:$0x1]
  %v38 = vld [vmem:[%s0 + $0x60] sm:$0xf]
  %v39 = vld [vmem:[%s0 + $0x64] sm:$0x1]
  %v40 = vld [vmem:[%s0 + $0x68] sm:$0xf]
  %v41 = vld [vmem:[%s0 + $0x6c] sm:$0x1]
  %v42 = vld [vmem:[%s0 + $0x70] sm:$0xf]
  %v43 = vld [vmem:[%s0 + $0x74] sm:$0x1]
  %v44 = vld [vmem:[%s0 + $0x78] sm:$0xf]
  %v45 = vld [vmem:[%s0 + $0x7c] sm:$0x1]
  %v70 = vunpack.c.l.b16 %v14
  %v71 = vunpack.c.l.b16 %v15
  %v72 = vunpack.c.l.b16 %v16
  %v73 = vunpack.c.l.b16 %v17
  %v74 = vunpack.c.l.b16 %v18
  %v75 = vunpack.c.l.b16 %v19
  %v76 = vunpack.c.l.b16 %v20
  %v77 = vunpack.c.l.b16 %v21
  %v78 = vunpack.c.l.b16 %v22
  %v79 = vunpack.c.l.b16 %v23
  %v80 = vunpack.c.l.b16 %v24
  %v81 = vunpack.c.l.b16 %v25
  %v82 = vunpack.c.l.b16 %v30
  %v83 = vunpack.c.l.b16 %v31
  %v84 = vunpack.c.l.b16 %v32
  %v85 = vunpack.c.l.b16 %v33
  %v86 = vunpack.c.l.b16 %v34
  %v87 = vunpack.c.l.b16 %v35
  %v88 = vunpack.c.l.b16 %v36
  %v89 = vunpack.c.l.b16 %v37
  %v90 = vunpack.c.l.b16 %v38
  %v91 = vunpack.c.l.b16 %v39
  %v92 = vunpack.c.l.b16 %v40
  %v93 = vunpack.c.l.b16 %v41
  %v94 = vpack.c.b16 %v71, %v70
  %v95 = vpack.c.b16 %v73, %v72
  %v96 = vpack.c.b16 %v75, %v74
  %v97 = vpack.c.b16 %v77, %v76
  %v98 = vpack.c.b16 %v79, %v78
  %v99 = vpack.c.b16 %v81, %v80
  %v100 = vpack.c.b16 %v83, %v82
  %v101 = vpack.c.b16 %v85, %v84
  %v102 = vpack.c.b16 %v87, %v86
  %v103 = vpack.c.b16 %v89, %v88
  %v104 = vpack.c.b16 %v91, %v90
  %v105 = vpack.c.b16 %v93, %v92
  %v107 = vshrl.u32 %v94, 16
  %v109 = vshll.u32 %v94, 16
  %v111 = vrot.slane %v109, 1
  %v112 = vor.u32 %v107, %v111
  %v114 = vshrl.u32 %v95, 16
  %v116 = vshll.u32 %v95, 16
  %v118 = vrot.slane %v116, 1
  %v119 = vor.u32 %v114, %v118
  %v121 = vshrl.u32 %v96, 16
  %v123 = vshll.u32 %v96, 16
  %v125 = vrot.slane %v123, 1
  %v126 = vor.u32 %v121, %v125
  %v128 = vshrl.u32 %v97, 16
  %v130 = vshll.u32 %v97, 16
  %v132 = vrot.slane %v130, 1
  %v133 = vor.u32 %v128, %v132
  %v135 = vshrl.u32 %v98, 16
  %v137 = vshll.u32 %v98, 16
  %v139 = vrot.slane %v137, 1
  %v140 = vor.u32 %v135, %v139
  %v142 = vshrl.u32 %v99, 16
  %v144 = vshll.u32 %v99, 16
  %v146 = vrot.slane %v144, 1
  %v147 = vor.u32 %v142, %v146
  %v149 = vshrl.u32 %v100, 16
  %v151 = vshll.u32 %v100, 16
  %v153 = vrot.slane %v151, 1
  %v154 = vor.u32 %v149, %v153
  %v156 = vshrl.u32 %v101, 16
  %v158 = vshll.u32 %v101, 16
  %v160 = vrot.slane %v158, 1
  %v161 = vor.u32 %v156, %v160
  %v163 = vshrl.u32 %v102, 16
  %v165 = vshll.u32 %v102, 16
  %v167 = vrot.slane %v165, 1
  %v168 = vor.u32 %v163, %v167
  %v170 = vshrl.u32 %v103, 16
  %v172 = vshll.u32 %v103, 16
  %v174 = vrot.slane %v172, 1
  %v175 = vor.u32 %v170, %v174
  %v177 = vshrl.u32 %v104, 16
  %v179 = vshll.u32 %v104, 16
  %v181 = vrot.slane %v179, 1
  %v182 = vor.u32 %v177, %v181
  %v184 = vshrl.u32 %v105, 16
  %v186 = vshll.u32 %v105, 16
  %v188 = vrot.slane %v186, 1
  %v189 = vor.u32 %v184, %v188
  %v190 = vrot.slane %v94, 1
  %v191 = vrot.slane %v95, 1
  %v192 = vrot.slane %v96, 1
  %v193 = vrot.slane %v97, 1
  %v194 = vrot.slane %v98, 1
  %v195 = vrot.slane %v99, 1
  %v196 = vrot.slane %v100, 1
  %v197 = vrot.slane %v101, 1
  %v198 = vrot.slane %v102, 1
  %v199 = vrot.slane %v103, 1
  %v200 = vrot.slane %v104, 1
  %v201 = vrot.slane %v105, 1
  %v202 = vunpack.c.l.b16 %v112
  %v203 = vunpack.c.l.b16 %v190
  %v204 = vunpack.c.l.b16 %v119
  %v205 = vunpack.c.l.b16 %v191
  %v206 = vunpack.c.l.b16 %v126
  %v207 = vunpack.c.l.b16 %v192
  %v208 = vunpack.c.l.b16 %v133
  %v209 = vunpack.c.l.b16 %v193
  %v210 = vunpack.c.l.b16 %v140
  %v211 = vunpack.c.l.b16 %v194
  %v212 = vunpack.c.l.b16 %v147
  %v213 = vunpack.c.l.b16 %v195
  %v214 = vunpack.c.l.b16 %v154
  %v215 = vunpack.c.l.b16 %v196
  %v216 = vunpack.c.l.b16 %v161
  %v217 = vunpack.c.l.b16 %v197
  %v218 = vunpack.c.l.b16 %v168
  %v219 = vunpack.c.l.b16 %v198
  %v220 = vunpack.c.l.b16 %v175
  %v221 = vunpack.c.l.b16 %v199
  %v222 = vunpack.c.l.b16 %v182
  %v223 = vunpack.c.l.b16 %v200
  %v224 = vunpack.c.l.b16 %v189
  %v225 = vunpack.c.l.b16 %v201
  %v226 = vld [vmem:[%s1] sm:$0xf]
  %v227 = vld [vmem:[%s1 + $0x4] sm:$0xf]
  %v228 = vld [vmem:[%s1 + $0x8] sm:$0xf]
  %v229 = vld [vmem:[%s1 + $0xc] sm:$0xf]
  %v230 = vld [vmem:[%s1 + $0x10] sm:$0xf]
  %v231 = vld [vmem:[%s1 + $0x14] sm:$0xf]
  %v232 = vld [vmem:[%s1 + $0x18] sm:$0xf]
  %v233 = vld [vmem:[%s1 + $0x1c] sm:$0xf]
  %v234 = vld [vmem:[%s1 + $0x20] sm:$0xf]
  %v235 = vld [vmem:[%s1 + $0x24] sm:$0xf]
  %v236 = vld [vmem:[%s1 + $0x28] sm:$0xf]
  %v237 = vld [vmem:[%s1 + $0x2c] sm:$0xf]
  %v238 = vld [vmem:[%s1 + $0x30] sm:$0xf]
  %v239 = vld [vmem:[%s1 + $0x34] sm:$0xf]
  %v240 = vld [vmem:[%s1 + $0x38] sm:$0xf]
  %v241 = vld [vmem:[%s1 + $0x3c] sm:$0xf]
  %v242 = vld [vmem:[%s1 + $0x40] sm:$0xf]
  %v243 = vld [vmem:[%s1 + $0x44] sm:$0xf]
  %v244 = vld [vmem:[%s1 + $0x48] sm:$0xf]
  %v245 = vld [vmem:[%s1 + $0x4c] sm:$0xf]
  %v246 = vld [vmem:[%s1 + $0x50] sm:$0xf]
  %v247 = vld [vmem:[%s1 + $0x54] sm:$0xf]
  %v248 = vld [vmem:[%s1 + $0x58] sm:$0xf]
  %v249 = vld [vmem:[%s1 + $0x5c] sm:$0xf]
  %v250 = vld [vmem:[%s1 + $0x60] sm:$0xf]
  %v251 = vld [vmem:[%s1 + $0x64] sm:$0xf]
  %v252 = vld [vmem:[%s1 + $0x68] sm:$0xf]
  %v253 = vld [vmem:[%s1 + $0x6c] sm:$0xf]
  %v254 = vld [vmem:[%s1 + $0x70] sm:$0xf]
  %v255 = vld [vmem:[%s1 + $0x74] sm:$0xf]
  %v256 = vld [vmem:[%s1 + $0x78] sm:$0xf]
  %v257 = vld [vmem:[%s1 + $0x7c] sm:$0xf]
  %v258 = vld [vmem:[%s1 + $0x80] sm:$0xf]
  %v259 = vld [vmem:[%s1 + $0x84] sm:$0xf]
  %v260 = vld [vmem:[%s1 + $0x88] sm:$0xf]
  %v261 = vld [vmem:[%s1 + $0x8c] sm:$0xf]
  %v262 = vld [vmem:[%s1 + $0x90] sm:$0xf]
  %v263 = vld [vmem:[%s1 + $0x94] sm:$0xf]
  %v264 = vld [vmem:[%s1 + $0x98] sm:$0xf]
  %v265 = vld [vmem:[%s1 + $0x9c] sm:$0xf]
  %v266 = vld [vmem:[%s1 + $0xa0] sm:$0xf]
  %v267 = vld [vmem:[%s1 + $0xa4] sm:$0xf]
  %v268 = vld [vmem:[%s1 + $0xa8] sm:$0xf]
  %v269 = vld [vmem:[%s1 + $0xac] sm:$0xf]
  %v270 = vld [vmem:[%s1 + $0xb0] sm:$0xf]
  %v271 = vld [vmem:[%s1 + $0xb4] sm:$0xf]
  %v272 = vld [vmem:[%s1 + $0xb8] sm:$0xf]
  %v273 = vld [vmem:[%s1 + $0xbc] sm:$0xf]
  %v278 = vunpack.c.l.b16 %v26
  %v279 = vunpack.c.l.b16 %v27
  %v280 = vunpack.c.l.b16 %v42
  %v281 = vunpack.c.l.b16 %v43
  %v282 = vpack.c.b16 %v279, %v278
  %v283 = vpack.c.b16 %v281, %v280
  %v285 = vshrl.u32 %v282, 16
  %v287 = vshll.u32 %v282, 16
  %v289 = vrot.slane %v287, 1
  %v290 = vor.u32 %v285, %v289
  %v292 = vshrl.u32 %v283, 16
  %v294 = vshll.u32 %v283, 16
  %v296 = vrot.slane %v294, 1
  %v297 = vor.u32 %v292, %v296
  %v298 = vrot.slane %v282, 1
  %v299 = vrot.slane %v283, 1
  %v300 = vunpack.c.l.b16 %v290
  %v301 = vunpack.c.l.b16 %v298
  %v302 = vunpack.c.l.b16 %v297
  %v303 = vunpack.c.l.b16 %v299
  %s304 = scalar_lea.vmem %s1, 192
  %v305 = vld [vmem:[%s304] sm:$0xf]
  %v306 = vld [vmem:[%s304 + $0x4] sm:$0xf]
  %v307 = vld [vmem:[%s304 + $0x8] sm:$0xf]
  %v308 = vld [vmem:[%s304 + $0xc] sm:$0xf]
  %v309 = vld [vmem:[%s304 + $0x10] sm:$0xf]
  %v310 = vld [vmem:[%s304 + $0x14] sm:$0xf]
  %v311 = vld [vmem:[%s304 + $0x18] sm:$0xf]
  %v312 = vld [vmem:[%s304 + $0x1c] sm:$0xf]
  %v313 = vld [vmem:[%s304 + $0x20] sm:$0xf]
  %v314 = vld [vmem:[%s304 + $0x24] sm:$0xf]
  %v315 = vld [vmem:[%s304 + $0x28] sm:$0xf]
  %v316 = vld [vmem:[%s304 + $0x2c] sm:$0xf]
  %v317 = vld [vmem:[%s304 + $0x30] sm:$0xf]
  %v318 = vld [vmem:[%s304 + $0x34] sm:$0xf]
  %v319 = vld [vmem:[%s304 + $0x38] sm:$0xf]
  %v320 = vld [vmem:[%s304 + $0x3c] sm:$0xf]
  %v321 = vld [vmem:[%s304 + $0x40] sm:$0xf]
  %v322 = vld [vmem:[%s304 + $0x44] sm:$0xf]
  %v323 = vld [vmem:[%s304 + $0x48] sm:$0xf]
  %v324 = vld [vmem:[%s304 + $0x4c] sm:$0xf]
  %v325 = vld [vmem:[%s304 + $0x50] sm:$0xf]
  %v326 = vld [vmem:[%s304 + $0x54] sm:$0xf]
  %v327 = vld [vmem:[%s304 + $0x58] sm:$0xf]
  %v328 = vld [vmem:[%s304 + $0x5c] sm:$0xf]
  %v329 = vld [vmem:[%s304 + $0x60] sm:$0xf]
  %v330 = vld [vmem:[%s304 + $0x64] sm:$0xf]
  %v331 = vld [vmem:[%s304 + $0x68] sm:$0xf]
  %v332 = vld [vmem:[%s304 + $0x6c] sm:$0xf]
  %v333 = vld [vmem:[%s304 + $0x70] sm:$0xf]
  %v334 = vld [vmem:[%s304 + $0x74] sm:$0xf]
  %v335 = vld [vmem:[%s304 + $0x78] sm:$0xf]
  %v336 = vld [vmem:[%s304 + $0x7c] sm:$0xf]
  %v337 = vld [vmem:[%s304 + $0x80] sm:$0xf]
  %v338 = vld [vmem:[%s304 + $0x84] sm:$0xf]
  %v339 = vld [vmem:[%s304 + $0x88] sm:$0xf]
  %v340 = vld [vmem:[%s304 + $0x8c] sm:$0xf]
  %v341 = vld [vmem:[%s304 + $0x90] sm:$0xf]
  %v342 = vld [vmem:[%s304 + $0x94] sm:$0xf]
  %v343 = vld [vmem:[%s304 + $0x98] sm:$0xf]
  %v344 = vld [vmem:[%s304 + $0x9c] sm:$0xf]
  %v345 = vld [vmem:[%s304 + $0xa0] sm:$0xf]
  %v346 = vld [vmem:[%s304 + $0xa4] sm:$0xf]
  %v347 = vld [vmem:[%s304 + $0xa8] sm:$0xf]
  %v348 = vld [vmem:[%s304 + $0xac] sm:$0xf]
  %v349 = vld [vmem:[%s304 + $0xb0] sm:$0xf]
  %v350 = vld [vmem:[%s304 + $0xb4] sm:$0xf]
  %v351 = vld [vmem:[%s304 + $0xb8] sm:$0xf]
  %v352 = vld [vmem:[%s304 + $0xbc] sm:$0xf]
  %v353 = vpack.c.b16 %v74, %v72
  %v354 = vpack.c.b16 %v206, %v204
  %v355 = vpack.c.b16 %v207, %v205
  %v356 = vpack.c.b16 %v78, %v76
  %v357 = vpack.c.b16 %v210, %v208
  %v358 = vpack.c.b16 %v211, %v209
  %v359 = vpack.c.b16 %v278, %v80
  %v360 = vpack.c.b16 %v300, %v212
  %v361 = vpack.c.b16 %v301, %v213
  %v362 = vpack.c.b16 %v86, %v84
  %v363 = vpack.c.b16 %v218, %v216
  %v364 = vpack.c.b16 %v219, %v217
  %v365 = vpack.c.b16 %v90, %v88
  %v366 = vpack.c.b16 %v222, %v220
  %v367 = vpack.c.b16 %v223, %v221
  %v368 = vpack.c.b16 %v280, %v92
  %v369 = vpack.c.b16 %v302, %v224
  %v370 = vpack.c.b16 %v303, %v225
  %v437 = vunpack.c.l.b16 %v305
  %v438 = vunpack.c.l.b16 %v306
  %v439 = vunpack.c.l.b16 %v307
  %v440 = vunpack.c.l.b16 %v308
  %v441 = vunpack.c.l.b16 %v309
  %v442 = vunpack.c.l.b16 %v310
  %v443 = vunpack.c.l.b16 %v311
  %v444 = vunpack.c.l.b16 %v312
  %v445 = vunpack.c.l.b16 %v313
  %v446 = vunpack.c.l.b16 %v314
  %v447 = vunpack.c.l.b16 %v315
  %v448 = vunpack.c.l.b16 %v316
  %v449 = vunpack.c.l.b16 %v317
  %v450 = vunpack.c.l.b16 %v318
  %v451 = vunpack.c.l.b16 %v319
  %v452 = vunpack.c.l.b16 %v320
  %v453 = vunpack.c.l.b16 %v321
  %v454 = vunpack.c.l.b16 %v322
  %v455 = vunpack.c.l.b16 %v323
  %v456 = vunpack.c.l.b16 %v324
  %v457 = vunpack.c.l.b16 %v325
  %v458 = vunpack.c.l.b16 %v326
  %v459 = vunpack.c.l.b16 %v327
  %v460 = vunpack.c.l.b16 %v328
  %v461 = vunpack.c.l.b16 %v329
  %v462 = vunpack.c.l.b16 %v330
  %v463 = vunpack.c.l.b16 %v331
  %v464 = vunpack.c.l.b16 %v332
  %v465 = vunpack.c.l.b16 %v333
  %v466 = vunpack.c.l.b16 %v334
  %v467 = vunpack.c.l.b16 %v335
  %v468 = vunpack.c.l.b16 %v336
  %v469 = vunpack.c.l.b16 %v337
  %v470 = vunpack.c.l.b16 %v338
  %v471 = vunpack.c.l.b16 %v339
  %v472 = vunpack.c.l.b16 %v340
  %v473 = vunpack.c.l.b16 %v341
  %v474 = vunpack.c.l.b16 %v342
  %v475 = vunpack.c.l.b16 %v343
  %v476 = vunpack.c.l.b16 %v344
  %v477 = vunpack.c.l.b16 %v345
  %v478 = vunpack.c.l.b16 %v346
  %v479 = vunpack.c.l.b16 %v347
  %v480 = vunpack.c.l.b16 %v348
  %v481 = vunpack.c.l.b16 %v349
  %v482 = vunpack.c.l.b16 %v350
  %v483 = vunpack.c.l.b16 %v351
  %v484 = vunpack.c.l.b16 %v352
  %v485 = vpack.c.b16 %v438, %v437
  %v486 = vpack.c.b16 %v440, %v439
  %v487 = vpack.c.b16 %v442, %v441
  %v488 = vpack.c.b16 %v444, %v443
  %v489 = vpack.c.b16 %v446, %v445
  %v490 = vpack.c.b16 %v448, %v447
  %v491 = vpack.c.b16 %v450, %v449
  %v492 = vpack.c.b16 %v452, %v451
  %v493 = vpack.c.b16 %v454, %v453
  %v494 = vpack.c.b16 %v456, %v455
  %v495 = vpack.c.b16 %v458, %v457
  %v496 = vpack.c.b16 %v460, %v459
  %v497 = vpack.c.b16 %v462, %v461
  %v498 = vpack.c.b16 %v464, %v463
  %v499 = vpack.c.b16 %v466, %v465
  %v500 = vpack.c.b16 %v468, %v467
  %v501 = vpack.c.b16 %v470, %v469
  %v502 = vpack.c.b16 %v472, %v471
  %v503 = vpack.c.b16 %v474, %v473
  %v504 = vpack.c.b16 %v476, %v475
  %v505 = vpack.c.b16 %v478, %v477
  %v506 = vpack.c.b16 %v480, %v479
  %v507 = vpack.c.b16 %v482, %v481
  %v508 = vpack.c.b16 %v484, %v483
  %533 = vmatpush.bf16.msra.mxu0 %v492
  %534 = vmatpush.bf16.msra.mxu0 %v491
  %535 = vmatpush.bf16.msra.mxu0 %v490
  %536 = vmatpush.bf16.msra.mxu0 %v489
  %537 = vmatpush.bf16.msra.mxu0 %v488
  %538 = vmatpush.bf16.msra.mxu0 %v487
  %539 = vmatpush.bf16.msra.mxu0 %v486
  %540 = vmatpush.bf16.msra.mxu0 %v485
  %541 = vmatmul.bf16.gmra.mxu0 %v353
  %v542 = vpop.f32.mrf.mxu0
  %v543 = vadd.f32 0.0, %v542
  %v544 = vpop.f32.mrf.mxu0
  %v545 = vadd.f32 0.0, %v544
  %546 = vmatmul.bf16.gmra.mxu0 %v356
  %v547 = vpop.f32.mrf.mxu0
  %v548 = vadd.f32 0.0, %v547
  %v549 = vpop.f32.mrf.mxu0
  %v550 = vadd.f32 0.0, %v549
  %551 = vmatmul.bf16.gmra.mxu0 %v359
  %v552 = vpop.f32.mrf.mxu0
  %v553 = vadd.f32 0.0, %v552
  %v554 = vpop.f32.mrf.mxu0
  %v555 = vadd.f32 0.0, %v554
  %556 = vmatmul.bf16.gmra.mxu0 %v362
  %v557 = vpop.f32.mrf.mxu0
  %v558 = vadd.f32 0.0, %v557
  %v559 = vpop.f32.mrf.mxu0
  %v560 = vadd.f32 0.0, %v559
  %561 = vmatmul.bf16.gmra.mxu0 %v365
  %v562 = vpop.f32.mrf.mxu0
  %v563 = vadd.f32 0.0, %v562
  %v564 = vpop.f32.mrf.mxu0
  %v565 = vadd.f32 0.0, %v564
  %566 = vmatmul.bf16.gmra.mxu0 %v368
  %v567 = vpop.f32.mrf.mxu0
  %v568 = vadd.f32 0.0, %v567
  %v569 = vpop.f32.mrf.mxu0
  %v570 = vadd.f32 0.0, %v569
  %571 = vdwg.mxu0
  %572 = vmatpush.bf16.msra.mxu0 %v500
  %573 = vmatpush.bf16.msra.mxu0 %v499
  %574 = vmatpush.bf16.msra.mxu0 %v498
  %575 = vmatpush.bf16.msra.mxu0 %v497
  %576 = vmatpush.bf16.msra.mxu0 %v496
  %577 = vmatpush.bf16.msra.mxu0 %v495
  %578 = vmatpush.bf16.msra.mxu0 %v494
  %579 = vmatpush.bf16.msra.mxu0 %v493
  %580 = vmatmul.bf16.gmra.mxu0 %v354
  %v581 = vpop.f32.mrf.mxu0
  %v582 = vadd.f32 %v543, %v581
  %v583 = vpop.f32.mrf.mxu0
  %v584 = vadd.f32 %v545, %v583
  %585 = vmatmul.bf16.gmra.mxu0 %v357
  %v586 = vpop.f32.mrf.mxu0
  %v587 = vadd.f32 %v548, %v586
  %v588 = vpop.f32.mrf.mxu0
  %v589 = vadd.f32 %v550, %v588
  %590 = vmatmul.bf16.gmra.mxu0 %v360
  %v591 = vpop.f32.mrf.mxu0
  %v592 = vadd.f32 %v553, %v591
  %v593 = vpop.f32.mrf.mxu0
  %v594 = vadd.f32 %v555, %v593
  %595 = vmatmul.bf16.gmra.mxu0 %v363
  %v596 = vpop.f32.mrf.mxu0
  %v597 = vadd.f32 %v558, %v596
  %v598 = vpop.f32.mrf.mxu0
  %v599 = vadd.f32 %v560, %v598
  %600 = vmatmul.bf16.gmra.mxu0 %v366
  %v601 = vpop.f32.mrf.mxu0
  %v602 = vadd.f32 %v563, %v601
  %v603 = vpop.f32.mrf.mxu0
  %v604 = vadd.f32 %v565, %v603
  %605 = vmatmul.bf16.gmra.mxu0 %v369
  %v606 = vpop.f32.mrf.mxu0
  %v607 = vadd.f32 %v568, %v606
  %v608 = vpop.f32.mrf.mxu0
  %v609 = vadd.f32 %v570, %v608
  %610 = vdwg.mxu0
  %611 = vmatpush.bf16.msra.mxu0 %v508
  %612 = vmatpush.bf16.msra.mxu0 %v507
  %613 = vmatpush.bf16.msra.mxu0 %v506
  %614 = vmatpush.bf16.msra.mxu0 %v505
  %615 = vmatpush.bf16.msra.mxu0 %v504
  %616 = vmatpush.bf16.msra.mxu0 %v503
  %617 = vmatpush.bf16.msra.mxu0 %v502
  %618 = vmatpush.bf16.msra.mxu0 %v501
  %619 = vmatmul.bf16.gmra.mxu0 %v355
  %v620 = vpop.f32.mrf.mxu0
  %v621 = vadd.f32 %v582, %v620
  %v622 = vpop.f32.mrf.mxu0
  %v623 = vadd.f32 %v584, %v622
  %624 = vmatmul.bf16.gmra.mxu0 %v358
  %v625 = vpop.f32.mrf.mxu0
  %v626 = vadd.f32 %v587, %v625
  %v627 = vpop.f32.mrf.mxu0
  %v628 = vadd.f32 %v589, %v627
  %629 = vmatmul.bf16.gmra.mxu0 %v361
  %v630 = vpop.f32.mrf.mxu0
  %v631 = vadd.f32 %v592, %v630
  %v632 = vpop.f32.mrf.mxu0
  %v633 = vadd.f32 %v594, %v632
  %634 = vmatmul.bf16.gmra.mxu0 %v364
  %v635 = vpop.f32.mrf.mxu0
  %v636 = vadd.f32 %v597, %v635
  %v637 = vpop.f32.mrf.mxu0
  %v638 = vadd.f32 %v599, %v637
  %639 = vmatmul.bf16.gmra.mxu0 %v367
  %v640 = vpop.f32.mrf.mxu0
  %v641 = vadd.f32 %v602, %v640
  %v642 = vpop.f32.mrf.mxu0
  %v643 = vadd.f32 %v604, %v642
  %644 = vmatmul.bf16.gmra.mxu0 %v370
  %v645 = vpop.f32.mrf.mxu0
  %v646 = vadd.f32 %v607, %v645
  %v647 = vpop.f32.mrf.mxu0
  %v648 = vadd.f32 %v609, %v647
  %649 = vdwg.mxu0
  %v650 = vpack.c.b16 %v72, %v70
  %v651 = vpack.c.b16 %v204, %v202
  %v652 = vpack.c.b16 %v205, %v203
  %v653 = vpack.c.b16 %v76, %v74
  %v654 = vpack.c.b16 %v208, %v206
  %v655 = vpack.c.b16 %v209, %v207
  %v656 = vpack.c.b16 %v80, %v78
  %v657 = vpack.c.b16 %v212, %v210
  %v658 = vpack.c.b16 %v213, %v211
  %v659 = vpack.c.b16 %v84, %v82
  %v660 = vpack.c.b16 %v216, %v214
  %v661 = vpack.c.b16 %v217, %v215
  %v662 = vpack.c.b16 %v88, %v86
  %v663 = vpack.c.b16 %v220, %v218
  %v664 = vpack.c.b16 %v221, %v219
  %v665 = vpack.c.b16 %v92, %v90
  %v666 = vpack.c.b16 %v224, %v222
  %v667 = vpack.c.b16 %v225, %v223
  %v734 = vunpack.c.l.b16 %v226
  %v735 = vunpack.c.l.b16 %v227
  %v736 = vunpack.c.l.b16 %v228
  %v737 = vunpack.c.l.b16 %v229
  %v738 = vunpack.c.l.b16 %v230
  %v739 = vunpack.c.l.b16 %v231
  %v740 = vunpack.c.l.b16 %v232
  %v741 = vunpack.c.l.b16 %v233
  %v742 = vunpack.c.l.b16 %v234
  %v743 = vunpack.c.l.b16 %v235
  %v744 = vunpack.c.l.b16 %v236
  %v745 = vunpack.c.l.b16 %v237
  %v746 = vunpack.c.l.b16 %v238
  %v747 = vunpack.c.l.b16 %v239
  %v748 = vunpack.c.l.b16 %v240
  %v749 = vunpack.c.l.b16 %v241
  %v750 = vunpack.c.l.b16 %v242
  %v751 = vunpack.c.l.b16 %v243
  %v752 = vunpack.c.l.b16 %v244
  %v753 = vunpack.c.l.b16 %v245
  %v754 = vunpack.c.l.b16 %v246
  %v755 = vunpack.c.l.b16 %v247
  %v756 = vunpack.c.l.b16 %v248
  %v757 = vunpack.c.l.b16 %v249
  %v758 = vunpack.c.l.b16 %v250
  %v759 = vunpack.c.l.b16 %v251
  %v760 = vunpack.c.l.b16 %v252
  %v761 = vunpack.c.l.b16 %v253
  %v762 = vunpack.c.l.b16 %v254
  %v763 = vunpack.c.l.b16 %v255
  %v764 = vunpack.c.l.b16 %v256
  %v765 = vunpack.c.l.b16 %v257
  %v766 = vunpack.c.l.b16 %v258
  %v767 = vunpack.c.l.b16 %v259
  %v768 = vunpack.c.l.b16 %v260
  %v769 = vunpack.c.l.b16 %v261
  %v770 = vunpack.c.l.b16 %v262
  %v771 = vunpack.c.l.b16 %v263
  %v772 = vunpack.c.l.b16 %v264
  %v773 = vunpack.c.l.b16 %v265
  %v774 = vunpack.c.l.b16 %v266
  %v775 = vunpack.c.l.b16 %v267
  %v776 = vunpack.c.l.b16 %v268
  %v777 = vunpack.c.l.b16 %v269
  %v778 = vunpack.c.l.b16 %v270
  %v779 = vunpack.c.l.b16 %v271
  %v780 = vunpack.c.l.b16 %v272
  %v781 = vunpack.c.l.b16 %v273
  %v782 = vpack.c.b16 %v735, %v734
  %v783 = vpack.c.b16 %v737, %v736
  %v784 = vpack.c.b16 %v739, %v738
  %v785 = vpack.c.b16 %v741, %v740
  %v786 = vpack.c.b16 %v743, %v742
  %v787 = vpack.c.b16 %v745, %v744
  %v788 = vpack.c.b16 %v747, %v746
  %v789 = vpack.c.b16 %v749, %v748
  %v790 = vpack.c.b16 %v751, %v750
  %v791 = vpack.c.b16 %v753, %v752
  %v792 = vpack.c.b16 %v755, %v754
  %v793 = vpack.c.b16 %v757, %v756
  %v794 = vpack.c.b16 %v759, %v758
  %v795 = vpack.c.b16 %v761, %v760
  %v796 = vpack.c.b16 %v763, %v762
  %v797 = vpack.c.b16 %v765, %v764
  %v798 = vpack.c.b16 %v767, %v766
  %v799 = vpack.c.b16 %v769, %v768
  %v800 = vpack.c.b16 %v771, %v770
  %v801 = vpack.c.b16 %v773, %v772
  %v802 = vpack.c.b16 %v775, %v774
  %v803 = vpack.c.b16 %v777, %v776
  %v804 = vpack.c.b16 %v779, %v778
  %v805 = vpack.c.b16 %v781, %v780
  %830 = vmatpush.bf16.msra.mxu0 %v789
  %831 = vmatpush.bf16.msra.mxu0 %v788
  %832 = vmatpush.bf16.msra.mxu0 %v787
  %833 = vmatpush.bf16.msra.mxu0 %v786
  %834 = vmatpush.bf16.msra.mxu0 %v785
  %835 = vmatpush.bf16.msra.mxu0 %v784
  %836 = vmatpush.bf16.msra.mxu0 %v783
  %837 = vmatpush.bf16.msra.mxu0 %v782
  %838 = vmatmul.bf16.gmra.mxu0 %v650
  %v839 = vpop.f32.mrf.mxu0
  %v840 = vadd.f32 %v621, %v839
  %v841 = vpop.f32.mrf.mxu0
  %v842 = vadd.f32 %v623, %v841
  %843 = vmatmul.bf16.gmra.mxu0 %v653
  %v844 = vpop.f32.mrf.mxu0
  %v845 = vadd.f32 %v626, %v844
  %v846 = vpop.f32.mrf.mxu0
  %v847 = vadd.f32 %v628, %v846
  %848 = vmatmul.bf16.gmra.mxu0 %v656
  %v849 = vpop.f32.mrf.mxu0
  %v850 = vadd.f32 %v631, %v849
  %v851 = vpop.f32.mrf.mxu0
  %v852 = vadd.f32 %v633, %v851
  %853 = vmatmul.bf16.gmra.mxu0 %v659
  %v854 = vpop.f32.mrf.mxu0
  %v855 = vadd.f32 %v636, %v854
  %v856 = vpop.f32.mrf.mxu0
  %v857 = vadd.f32 %v638, %v856
  %858 = vmatmul.bf16.gmra.mxu0 %v662
  %v859 = vpop.f32.mrf.mxu0
  %v860 = vadd.f32 %v641, %v859
  %v861 = vpop.f32.mrf.mxu0
  %v862 = vadd.f32 %v643, %v861
  %863 = vmatmul.bf16.gmra.mxu0 %v665
  %v864 = vpop.f32.mrf.mxu0
  %v865 = vadd.f32 %v646, %v864
  %v866 = vpop.f32.mrf.mxu0
  %v867 = vadd.f32 %v648, %v866
  %868 = vdwg.mxu0
  %869 = vmatpush.bf16.msra.mxu0 %v797
  %870 = vmatpush.bf16.msra.mxu0 %v796
  %871 = vmatpush.bf16.msra.mxu0 %v795
  %872 = vmatpush.bf16.msra.mxu0 %v794
  %873 = vmatpush.bf16.msra.mxu0 %v793
  %874 = vmatpush.bf16.msra.mxu0 %v792
  %875 = vmatpush.bf16.msra.mxu0 %v791
  %876 = vmatpush.bf16.msra.mxu0 %v790
  %877 = vmatmul.bf16.gmra.mxu0 %v651
  %v878 = vpop.f32.mrf.mxu0
  %v879 = vadd.f32 %v840, %v878
  %v880 = vpop.f32.mrf.mxu0
  %v881 = vadd.f32 %v842, %v880
  %882 = vmatmul.bf16.gmra.mxu0 %v654
  %v883 = vpop.f32.mrf.mxu0
  %v884 = vadd.f32 %v845, %v883
  %v885 = vpop.f32.mrf.mxu0
  %v886 = vadd.f32 %v847, %v885
  %887 = vmatmul.bf16.gmra.mxu0 %v657
  %v888 = vpop.f32.mrf.mxu0
  %v889 = vadd.f32 %v850, %v888
  %v890 = vpop.f32.mrf.mxu0
  %v891 = vadd.f32 %v852, %v890
  %892 = vmatmul.bf16.gmra.mxu0 %v660
  %v893 = vpop.f32.mrf.mxu0
  %v894 = vadd.f32 %v855, %v893
  %v895 = vpop.f32.mrf.mxu0
  %v896 = vadd.f32 %v857, %v895
  %897 = vmatmul.bf16.gmra.mxu0 %v663
  %v898 = vpop.f32.mrf.mxu0
  %v899 = vadd.f32 %v860, %v898
  %v900 = vpop.f32.mrf.mxu0
  %v901 = vadd.f32 %v862, %v900
  %902 = vmatmul.bf16.gmra.mxu0 %v666
  %v903 = vpop.f32.mrf.mxu0
  %v904 = vadd.f32 %v865, %v903
  %v905 = vpop.f32.mrf.mxu0
  %v906 = vadd.f32 %v867, %v905
  %907 = vdwg.mxu0
  %908 = vmatpush.bf16.msra.mxu0 %v805
  %909 = vmatpush.bf16.msra.mxu0 %v804
  %910 = vmatpush.bf16.msra.mxu0 %v803
  %911 = vmatpush.bf16.msra.mxu0 %v802
  %912 = vmatpush.bf16.msra.mxu0 %v801
  %913 = vmatpush.bf16.msra.mxu0 %v800
  %914 = vmatpush.bf16.msra.mxu0 %v799
  %915 = vmatpush.bf16.msra.mxu0 %v798
  %916 = vmatmul.bf16.gmra.mxu0 %v652
  %v917 = vpop.f32.mrf.mxu0
  %v918 = vadd.f32 %v879, %v917
  %v919 = vpop.f32.mrf.mxu0
  %v920 = vadd.f32 %v881, %v919
  %921 = vmatmul.bf16.gmra.mxu0 %v655
  %v922 = vpop.f32.mrf.mxu0
  %v923 = vadd.f32 %v884, %v922
  %v924 = vpop.f32.mrf.mxu0
  %v925 = vadd.f32 %v886, %v924
  %926 = vmatmul.bf16.gmra.mxu0 %v658
  %v927 = vpop.f32.mrf.mxu0
  %v928 = vadd.f32 %v889, %v927
  %v929 = vpop.f32.mrf.mxu0
  %v930 = vadd.f32 %v891, %v929
  %931 = vmatmul.bf16.gmra.mxu0 %v661
  %v932 = vpop.f32.mrf.mxu0
  %v933 = vadd.f32 %v894, %v932
  %v934 = vpop.f32.mrf.mxu0
  %v935 = vadd.f32 %v896, %v934
  %936 = vmatmul.bf16.gmra.mxu0 %v664
  %v937 = vpop.f32.mrf.mxu0
  %v938 = vadd.f32 %v899, %v937
  %v939 = vpop.f32.mrf.mxu0
  %v940 = vadd.f32 %v901, %v939
  %941 = vmatmul.bf16.gmra.mxu0 %v667
  %v942 = vpop.f32.mrf.mxu0
  %v943 = vadd.f32 %v904, %v942
  %v944 = vpop.f32.mrf.mxu0
  %v945 = vadd.f32 %v906, %v944
  %946 = vdwg.mxu0
  %v951 = vunpack.c.l.b16 %v28
  %v952 = vunpack.c.l.b16 %v29
  %v953 = vunpack.c.l.b16 %v44
  %v954 = vunpack.c.l.b16 %v45
  %v955 = vpack.c.b16 %v952, %v951
  %v956 = vpack.c.b16 %v954, %v953
  %v958 = vshrl.u32 %v955, 16
  %v960 = vshll.u32 %v955, 16
  %v962 = vrot.slane %v960, 1
  %v963 = vor.u32 %v958, %v962
  %v965 = vshrl.u32 %v956, 16
  %v967 = vshll.u32 %v956, 16
  %v969 = vrot.slane %v967, 1
  %v970 = vor.u32 %v965, %v969
  %v971 = vrot.slane %v955, 1
  %v972 = vrot.slane %v956, 1
  %v973 = vunpack.c.l.b16 %v963
  %v974 = vunpack.c.l.b16 %v971
  %v975 = vunpack.c.l.b16 %v970
  %v976 = vunpack.c.l.b16 %v972
  %s977 = scalar_lea.vmem %s1, 384
  %v978 = vld [vmem:[%s977] sm:$0xf]
  %v979 = vld [vmem:[%s977 + $0x4] sm:$0xf]
  %v980 = vld [vmem:[%s977 + $0x8] sm:$0xf]
  %v981 = vld [vmem:[%s977 + $0xc] sm:$0xf]
  %v982 = vld [vmem:[%s977 + $0x10] sm:$0xf]
  %v983 = vld [vmem:[%s977 + $0x14] sm:$0xf]
  %v984 = vld [vmem:[%s977 + $0x18] sm:$0xf]
  %v985 = vld [vmem:[%s977 + $0x1c] sm:$0xf]
  %v986 = vld [vmem:[%s977 + $0x20] sm:$0xf]
  %v987 = vld [vmem:[%s977 + $0x24] sm:$0xf]
  %v988 = vld [vmem:[%s977 + $0x28] sm:$0xf]
  %v989 = vld [vmem:[%s977 + $0x2c] sm:$0xf]
  %v990 = vld [vmem:[%s977 + $0x30] sm:$0xf]
  %v991 = vld [vmem:[%s977 + $0x34] sm:$0xf]
  %v992 = vld [vmem:[%s977 + $0x38] sm:$0xf]
  %v993 = vld [vmem:[%s977 + $0x3c] sm:$0xf]
  %v994 = vld [vmem:[%s977 + $0x40] sm:$0xf]
  %v995 = vld [vmem:[%s977 + $0x44] sm:$0xf]
  %v996 = vld [vmem:[%s977 + $0x48] sm:$0xf]
  %v997 = vld [vmem:[%s977 + $0x4c] sm:$0xf]
  %v998 = vld [vmem:[%s977 + $0x50] sm:$0xf]
  %v999 = vld [vmem:[%s977 + $0x54] sm:$0xf]
  %v1000 = vld [vmem:[%s977 + $0x58] sm:$0xf]
  %v1001 = vld [vmem:[%s977 + $0x5c] sm:$0xf]
  %v1002 = vld [vmem:[%s977 + $0x60] sm:$0xf]
  %v1003 = vld [vmem:[%s977 + $0x64] sm:$0xf]
  %v1004 = vld [vmem:[%s977 + $0x68] sm:$0xf]
  %v1005 = vld [vmem:[%s977 + $0x6c] sm:$0xf]
  %v1006 = vld [vmem:[%s977 + $0x70] sm:$0xf]
  %v1007 = vld [vmem:[%s977 + $0x74] sm:$0xf]
  %v1008 = vld [vmem:[%s977 + $0x78] sm:$0xf]
  %v1009 = vld [vmem:[%s977 + $0x7c] sm:$0xf]
  %v1010 = vld [vmem:[%s977 + $0x80] sm:$0xf]
  %v1011 = vld [vmem:[%s977 + $0x84] sm:$0xf]
  %v1012 = vld [vmem:[%s977 + $0x88] sm:$0xf]
  %v1013 = vld [vmem:[%s977 + $0x8c] sm:$0xf]
  %v1014 = vld [vmem:[%s977 + $0x90] sm:$0xf]
  %v1015 = vld [vmem:[%s977 + $0x94] sm:$0xf]
  %v1016 = vld [vmem:[%s977 + $0x98] sm:$0xf]
  %v1017 = vld [vmem:[%s977 + $0x9c] sm:$0xf]
  %v1018 = vld [vmem:[%s977 + $0xa0] sm:$0xf]
  %v1019 = vld [vmem:[%s977 + $0xa4] sm:$0xf]
  %v1020 = vld [vmem:[%s977 + $0xa8] sm:$0xf]
  %v1021 = vld [vmem:[%s977 + $0xac] sm:$0xf]
  %v1022 = vld [vmem:[%s977 + $0xb0] sm:$0xf]
  %v1023 = vld [vmem:[%s977 + $0xb4] sm:$0xf]
  %v1024 = vld [vmem:[%s977 + $0xb8] sm:$0xf]
  %v1025 = vld [vmem:[%s977 + $0xbc] sm:$0xf]
  %v1026 = vpack.c.b16 %v951, %v278
  %v1027 = vpack.c.b16 %v973, %v300
  %v1028 = vpack.c.b16 %v974, %v301
  %v1029 = vpack.c.b16 %v953, %v280
  %v1030 = vpack.c.b16 %v975, %v302
  %v1031 = vpack.c.b16 %v976, %v303
  %v1086 = vunpack.c.l.b16 %v978
  %v1087 = vunpack.c.l.b16 %v979
  %v1088 = vunpack.c.l.b16 %v980
  %v1089 = vunpack.c.l.b16 %v981
  %v1090 = vunpack.c.l.b16 %v982
  %v1091 = vunpack.c.l.b16 %v983
  %v1092 = vunpack.c.l.b16 %v984
  %v1093 = vunpack.c.l.b16 %v985
  %v1094 = vunpack.c.l.b16 %v986
  %v1095 = vunpack.c.l.b16 %v987
  %v1096 = vunpack.c.l.b16 %v988
  %v1097 = vunpack.c.l.b16 %v989
  %v1098 = vunpack.c.l.b16 %v990
  %v1099 = vunpack.c.l.b16 %v991
  %v1100 = vunpack.c.l.b16 %v992
  %v1101 = vunpack.c.l.b16 %v993
  %v1102 = vunpack.c.l.b16 %v994
  %v1103 = vunpack.c.l.b16 %v995
  %v1104 = vunpack.c.l.b16 %v996
  %v1105 = vunpack.c.l.b16 %v997
  %v1106 = vunpack.c.l.b16 %v998
  %v1107 = vunpack.c.l.b16 %v999
  %v1108 = vunpack.c.l.b16 %v1000
  %v1109 = vunpack.c.l.b16 %v1001
  %v1110 = vunpack.c.l.b16 %v1002
  %v1111 = vunpack.c.l.b16 %v1003
  %v1112 = vunpack.c.l.b16 %v1004
  %v1113 = vunpack.c.l.b16 %v1005
  %v1114 = vunpack.c.l.b16 %v1006
  %v1115 = vunpack.c.l.b16 %v1007
  %v1116 = vunpack.c.l.b16 %v1008
  %v1117 = vunpack.c.l.b16 %v1009
  %v1118 = vunpack.c.l.b16 %v1010
  %v1119 = vunpack.c.l.b16 %v1011
  %v1120 = vunpack.c.l.b16 %v1012
  %v1121 = vunpack.c.l.b16 %v1013
  %v1122 = vunpack.c.l.b16 %v1014
  %v1123 = vunpack.c.l.b16 %v1015
  %v1124 = vunpack.c.l.b16 %v1016
  %v1125 = vunpack.c.l.b16 %v1017
  %v1126 = vunpack.c.l.b16 %v1018
  %v1127 = vunpack.c.l.b16 %v1019
  %v1128 = vunpack.c.l.b16 %v1020
  %v1129 = vunpack.c.l.b16 %v1021
  %v1130 = vunpack.c.l.b16 %v1022
  %v1131 = vunpack.c.l.b16 %v1023
  %v1132 = vunpack.c.l.b16 %v1024
  %v1133 = vunpack.c.l.b16 %v1025
  %v1134 = vpack.c.b16 %v1087, %v1086
  %v1135 = vpack.c.b16 %v1089, %v1088
  %v1136 = vpack.c.b16 %v1091, %v1090
  %v1137 = vpack.c.b16 %v1093, %v1092
  %v1138 = vpack.c.b16 %v1095, %v1094
  %v1139 = vpack.c.b16 %v1097, %v1096
  %v1140 = vpack.c.b16 %v1099, %v1098
  %v1141 = vpack.c.b16 %v1101, %v1100
  %v1142 = vpack.c.b16 %v1103, %v1102
  %v1143 = vpack.c.b16 %v1105, %v1104
  %v1144 = vpack.c.b16 %v1107, %v1106
  %v1145 = vpack.c.b16 %v1109, %v1108
  %v1146 = vpack.c.b16 %v1111, %v1110
  %v1147 = vpack.c.b16 %v1113, %v1112
  %v1148 = vpack.c.b16 %v1115, %v1114
  %v1149 = vpack.c.b16 %v1117, %v1116
  %v1150 = vpack.c.b16 %v1119, %v1118
  %v1151 = vpack.c.b16 %v1121, %v1120
  %v1152 = vpack.c.b16 %v1123, %v1122
  %v1153 = vpack.c.b16 %v1125, %v1124
  %v1154 = vpack.c.b16 %v1127, %v1126
  %v1155 = vpack.c.b16 %v1129, %v1128
  %v1156 = vpack.c.b16 %v1131, %v1130
  %v1157 = vpack.c.b16 %v1133, %v1132
  %1182 = vmatpush.bf16.msra.mxu0 %v1141
  %1183 = vmatpush.bf16.msra.mxu0 %v1140
  %1184 = vmatpush.bf16.msra.mxu0 %v1139
  %1185 = vmatpush.bf16.msra.mxu0 %v1138
  %1186 = vmatpush.bf16.msra.mxu0 %v1137
  %1187 = vmatpush.bf16.msra.mxu0 %v1136
  %1188 = vmatpush.bf16.msra.mxu0 %v1135
  %1189 = vmatpush.bf16.msra.mxu0 %v1134
  %1190 = vmatmul.bf16.gmra.mxu0 %v653
  %v1191 = vpop.f32.mrf.mxu0
  %v1192 = vadd.f32 0.0, %v1191
  %v1193 = vpop.f32.mrf.mxu0
  %v1194 = vadd.f32 0.0, %v1193
  %1195 = vmatmul.bf16.gmra.mxu0 %v656
  %v1196 = vpop.f32.mrf.mxu0
  %v1197 = vadd.f32 0.0, %v1196
  %v1198 = vpop.f32.mrf.mxu0
  %v1199 = vadd.f32 0.0, %v1198
  %1200 = vmatmul.bf16.gmra.mxu0 %v1026
  %v1201 = vpop.f32.mrf.mxu0
  %v1202 = vadd.f32 0.0, %v1201
  %v1203 = vpop.f32.mrf.mxu0
  %v1204 = vadd.f32 0.0, %v1203
  %1205 = vmatmul.bf16.gmra.mxu0 %v662
  %v1206 = vpop.f32.mrf.mxu0
  %v1207 = vadd.f32 0.0, %v1206
  %v1208 = vpop.f32.mrf.mxu0
  %v1209 = vadd.f32 0.0, %v1208
  %1210 = vmatmul.bf16.gmra.mxu0 %v665
  %v1211 = vpop.f32.mrf.mxu0
  %v1212 = vadd.f32 0.0, %v1211
  %v1213 = vpop.f32.mrf.mxu0
  %v1214 = vadd.f32 0.0, %v1213
  %1215 = vmatmul.bf16.gmra.mxu0 %v1029
  %v1216 = vpop.f32.mrf.mxu0
  %v1217 = vadd.f32 0.0, %v1216
  %v1218 = vpop.f32.mrf.mxu0
  %v1219 = vadd.f32 0.0, %v1218
  %1220 = vdwg.mxu0
  %1221 = vmatpush.bf16.msra.mxu0 %v1149
  %1222 = vmatpush.bf16.msra.mxu0 %v1148
  %1223 = vmatpush.bf16.msra.mxu0 %v1147
  %1224 = vmatpush.bf16.msra.mxu0 %v1146
  %1225 = vmatpush.bf16.msra.mxu0 %v1145
  %1226 = vmatpush.bf16.msra.mxu0 %v1144
  %1227 = vmatpush.bf16.msra.mxu0 %v1143
  %1228 = vmatpush.bf16.msra.mxu0 %v1142
  %1229 = vmatmul.bf16.gmra.mxu0 %v654
  %v1230 = vpop.f32.mrf.mxu0
  %v1231 = vadd.f32 %v1192, %v1230
  %v1232 = vpop.f32.mrf.mxu0
  %v1233 = vadd.f32 %v1194, %v1232
  %1234 = vmatmul.bf16.gmra.mxu0 %v657
  %v1235 = vpop.f32.mrf.mxu0
  %v1236 = vadd.f32 %v1197, %v1235
  %v1237 = vpop.f32.mrf.mxu0
  %v1238 = vadd.f32 %v1199, %v1237
  %1239 = vmatmul.bf16.gmra.mxu0 %v1027
  %v1240 = vpop.f32.mrf.mxu0
  %v1241 = vadd.f32 %v1202, %v1240
  %v1242 = vpop.f32.mrf.mxu0
  %v1243 = vadd.f32 %v1204, %v1242
  %1244 = vmatmul.bf16.gmra.mxu0 %v663
  %v1245 = vpop.f32.mrf.mxu0
  %v1246 = vadd.f32 %v1207, %v1245
  %v1247 = vpop.f32.mrf.mxu0
  %v1248 = vadd.f32 %v1209, %v1247
  %1249 = vmatmul.bf16.gmra.mxu0 %v666
  %v1250 = vpop.f32.mrf.mxu0
  %v1251 = vadd.f32 %v1212, %v1250
  %v1252 = vpop.f32.mrf.mxu0
  %v1253 = vadd.f32 %v1214, %v1252
  %1254 = vmatmul.bf16.gmra.mxu0 %v1030
  %v1255 = vpop.f32.mrf.mxu0
  %v1256 = vadd.f32 %v1217, %v1255
  %v1257 = vpop.f32.mrf.mxu0
  %v1258 = vadd.f32 %v1219, %v1257
  %1259 = vdwg.mxu0
  %1260 = vmatpush.bf16.msra.mxu0 %v1157
  %1261 = vmatpush.bf16.msra.mxu0 %v1156
  %1262 = vmatpush.bf16.msra.mxu0 %v1155
  %1263 = vmatpush.bf16.msra.mxu0 %v1154
  %1264 = vmatpush.bf16.msra.mxu0 %v1153
  %1265 = vmatpush.bf16.msra.mxu0 %v1152
  %1266 = vmatpush.bf16.msra.mxu0 %v1151
  %1267 = vmatpush.bf16.msra.mxu0 %v1150
  %1268 = vmatmul.bf16.gmra.mxu0 %v655
  %v1269 = vpop.f32.mrf.mxu0
  %v1270 = vadd.f32 %v1231, %v1269
  %v1271 = vpop.f32.mrf.mxu0
  %v1272 = vadd.f32 %v1233, %v1271
  %1273 = vmatmul.bf16.gmra.mxu0 %v658
  %v1274 = vpop.f32.mrf.mxu0
  %v1275 = vadd.f32 %v1236, %v1274
  %v1276 = vpop.f32.mrf.mxu0
  %v1277 = vadd.f32 %v1238, %v1276
  %1278 = vmatmul.bf16.gmra.mxu0 %v1028
  %v1279 = vpop.f32.mrf.mxu0
  %v1280 = vadd.f32 %v1241, %v1279
  %v1281 = vpop.f32.mrf.mxu0
  %v1282 = vadd.f32 %v1243, %v1281
  %1283 = vmatmul.bf16.gmra.mxu0 %v664
  %v1284 = vpop.f32.mrf.mxu0
  %v1285 = vadd.f32 %v1246, %v1284
  %v1286 = vpop.f32.mrf.mxu0
  %v1287 = vadd.f32 %v1248, %v1286
  %1288 = vmatmul.bf16.gmra.mxu0 %v667
  %v1289 = vpop.f32.mrf.mxu0
  %v1290 = vadd.f32 %v1251, %v1289
  %v1291 = vpop.f32.mrf.mxu0
  %v1292 = vadd.f32 %v1253, %v1291
  %1293 = vmatmul.bf16.gmra.mxu0 %v1031
  %v1294 = vpop.f32.mrf.mxu0
  %v1295 = vadd.f32 %v1256, %v1294
  %v1296 = vpop.f32.mrf.mxu0
  %v1297 = vadd.f32 %v1258, %v1296
  %1298 = vdwg.mxu0
  %v1299 = vadd.f32 %v918, %v1270
  %v1300 = vadd.f32 %v920, %v1272
  %v1301 = vadd.f32 %v923, %v1275
  %v1302 = vadd.f32 %v925, %v1277
  %v1303 = vadd.f32 %v928, %v1280
  %v1304 = vadd.f32 %v930, %v1282
  %v1305 = vadd.f32 %v933, %v1285
  %v1306 = vadd.f32 %v935, %v1287
  %v1307 = vadd.f32 %v938, %v1290
  %v1308 = vadd.f32 %v940, %v1292
  %v1309 = vadd.f32 %v943, %v1295
  %v1310 = vadd.f32 %v945, %v1297
  %v1311 = vld [vmem:[%s2] sm:$0x1]
  %v1313 = vperm.slane %v1311, 0
  %v1315 = vadd.f32 %v1299, %v1313
  %v1316 = vadd.f32 %v1300, %v1313
  %v1317 = vadd.f32 %v1301, %v1313
  %v1318 = vadd.f32 %v1302, %v1313
  %v1319 = vadd.f32 %v1303, %v1313
  %v1320 = vadd.f32 %v1304, %v1313
  %v1321 = vadd.f32 %v1305, %v1313
  %v1322 = vadd.f32 %v1306, %v1313
  %v1323 = vadd.f32 %v1307, %v1313
  %v1324 = vadd.f32 %v1308, %v1313
  %v1325 = vadd.f32 %v1309, %v1313
  %v1326 = vadd.f32 %v1310, %v1313
  %v1327 = vmax.f32 %v1315, 0.0
  %v1328 = vmax.f32 %v1316, 0.0
  %v1329 = vmax.f32 %v1317, 0.0
  %v1330 = vmax.f32 %v1318, 0.0
  %v1331 = vmax.f32 %v1319, 0.0
  %v1332 = vmax.f32 %v1320, 0.0
  %v1333 = vmax.f32 %v1321, 0.0
  %v1334 = vmax.f32 %v1322, 0.0
  %v1335 = vmax.f32 %v1323, 0.0
  %v1336 = vmax.f32 %v1324, 0.0
  %v1337 = vmax.f32 %v1325, 0.0
  %v1338 = vmax.f32 %v1326, 0.0
  %v1339 = vmax.f32 %v1327, %v1328
  %v1340 = vmax.f32 %v1329, %v1330
  %v1341 = vmax.f32 %v1331, %v1332
  %v1342 = vmax.f32 %v1333, %v1334
  %v1343 = vmax.f32 %v1335, %v1336
  %v1344 = vmax.f32 %v1337, %v1338
  %1345 = vst [vmem:[#allocation2] sm:$0xff] %v1339
  %1346 = vst [vmem:[#allocation2 + $0x8] sm:$0xff] %v1340
  %1347 = vst [vmem:[#allocation2 + $0x10] sm:$0xff] %v1341
  %1348 = vst [vmem:[#allocation2 + $0x18] sm:$0xff] %v1342
  %1349 = vst [vmem:[#allocation2 + $0x20] sm:$0xff] %v1343
  %1350 = vst [vmem:[#allocation2 + $0x28] sm:$0xff] %v1344
  %v1351 = vld [vmem:[#allocation2] ss:$2 sm:$0x7]
  %s1352 = scalar_lea.vmem [#allocation2], 8
  %v1353 = vld [vmem:[%s1352] ss:$2 sm:$0x7]
  %s1354 = scalar_lea.vmem [#allocation2], 16
  %v1355 = vld [vmem:[%s1354] ss:$2 sm:$0x7]
  %s1356 = scalar_lea.vmem [#allocation2], 24
  %v1357 = vld [vmem:[%s1356] ss:$2 sm:$0x7]
  %s1358 = scalar_lea.vmem [#allocation2], 32
  %v1359 = vld [vmem:[%s1358] ss:$2 sm:$0x7]
  %s1360 = scalar_lea.vmem [#allocation2], 40
  %v1361 = vld [vmem:[%s1360] ss:$2 sm:$0x7]
  %s1362 = scalar_lea.vmem [#allocation2], 1
  %v1363 = vld [vmem:[%s1362] ss:$2 sm:$0x7]
  %s1364 = scalar_lea.vmem [#allocation2], 9
  %v1365 = vld [vmem:[%s1364] ss:$2 sm:$0x7]
  %s1366 = scalar_lea.vmem [#allocation2], 17
  %v1367 = vld [vmem:[%s1366] ss:$2 sm:$0x7]
  %s1368 = scalar_lea.vmem [#allocation2], 25
  %v1369 = vld [vmem:[%s1368] ss:$2 sm:$0x7]
  %s1370 = scalar_lea.vmem [#allocation2], 33
  %v1371 = vld [vmem:[%s1370] ss:$2 sm:$0x7]
  %s1372 = scalar_lea.vmem [#allocation2], 41
  %v1373 = vld [vmem:[%s1372] ss:$2 sm:$0x7]
  %v1374 = vmax.f32 %v1351, %v1363
  %v1375 = vmax.f32 %v1353, %v1365
  %v1376 = vmax.f32 %v1355, %v1367
  %v1377 = vmax.f32 %v1357, %v1369
  %v1378 = vmax.f32 %v1359, %v1371
  %v1379 = vmax.f32 %v1361, %v1373
  %v1380 = vpack.c.bf16 %v1374, %v1374
  %v1381 = vpack.c.bf16 %v1375, %v1375
  %v1382 = vpack.c.bf16 %v1376, %v1376
  %v1383 = vpack.c.bf16 %v1377, %v1377
  %v1384 = vpack.c.bf16 %v1378, %v1378
  %v1385 = vpack.c.bf16 %v1379, %v1379
  %vm1386 = vcmask 1041408
  %vm1387 = vsmask.f32 1280
  %vm1388 = vmand %vm1386, %vm1387
  %v1389 = vld [vmem:[%s3] sm:$0x3]
  %v1390 = vsel %vm1388, %v1380, %v1389
  %1391 = vst [vmem:[%s3] sm:$0x3] %v1390
  %v1392 = vld [vmem:[%s3 + $0x2] sm:$0x3]
  %v1393 = vsel %vm1388, %v1381, %v1392
  %1394 = vst [vmem:[%s3 + $0x2] sm:$0x3] %v1393
  %v1395 = vld [vmem:[%s3 + $0x4] sm:$0x3]
  %v1396 = vsel %vm1388, %v1382, %v1395
  %1397 = vst [vmem:[%s3 + $0x4] sm:$0x3] %v1396
  %v1398 = vld [vmem:[%s3 + $0x6] sm:$0x3]
  %v1399 = vsel %vm1388, %v1383, %v1398
  %1400 = vst [vmem:[%s3 + $0x6] sm:$0x3] %v1399
  %v1401 = vld [vmem:[%s3 + $0x8] sm:$0x3]
  %v1402 = vsel %vm1388, %v1384, %v1401
  %1403 = vst [vmem:[%s3 + $0x8] sm:$0x3] %v1402
  %v1404 = vld [vmem:[%s3 + $0xa] sm:$0x3]
  %v1405 = vsel %vm1388, %v1385, %v1404
  %1406 = vst [vmem:[%s3 + $0xa] sm:$0x3] %v1405
  // Predicated region
  $region14: #{cnn_forward.4} parent=0 // pred_check
    _
  $region15: #{cnn_forward.4} parent=0 // pred_check_branch
    %1408 = sbr.rel (0) target = $region17
  $region16: #{cnn_forward.4} parent=0 // pred_region
    _
  $region17: #{cnn_forward.4} parent=0 // pred_fallthru
    _
  // Predicated region
  $region18: #{cnn_forward.4} parent=0 // pred_check
    _
  $region19: #{cnn_forward.4} parent=0 // pred_check_branch
    %1410 = sbr.rel (0) target = $region21
  $region20: #{cnn_forward.4} parent=0 // pred_region
    _
  $region21: #{cnn_forward.4} parent=0 // pred_fallthru
    _

</llo_original>
